<compile_context>
chip_gen: v5e
topology: v5e:2x2
jax: 0.10.0
libtpu: 0.0.40
codegen_flags: <defaults>
</compile_context>

<pallas_src>
import functools
import math

import jax
import jax.numpy as jnp
from jax.experimental import pallas as pl
from jax.experimental.pallas import tpu as pltpu


# ---------------------------------------------------------------------------
# small helpers
# ---------------------------------------------------------------------------

def _round_up(x, m):
    return ((x + m - 1) // m) * m


def _pad_rows(x, rows):
    pad = rows - x.shape[0]
    return x if pad == 0 else jnp.pad(x, ((0, pad), (0, 0)))


def _choose_row_tiles(M, *, sublane=16, target_rows=256):
    """Enough grid steps to amortize per-step overhead (and feed both v7x TCs),
    but never more tiles than sublane-groups of real rows."""
    want = max(2, pl.cdiv(M, target_rows))
    return max(1, min(pl.cdiv(M, sublane), want))


def _encoder_block_vmem_limit(T, d, lu, heads):
    """Rough VMEM budget for the fused encoder block: bf16 weights + double-buffered
    bf16 activation blocks + f32 live intermediates (qkv, scores, ctx, ffn hidden)."""
    bf2, f4 = 2, 4
    weights = bf2 * (d * 3 * d + d * d + 2 * d * lu) + f4 * (3 * d + 6 * d + lu)
    acts = 2 * 2 * bf2 * T * d                               # x in + out, double-buffered
    live = f4 * (T * 3 * d + heads * T * T + 2 * T * d + T * lu + 4 * T * d)
    est = weights + acts + live
    return int(min(64 * 1024 * 1024, max(16 * 1024 * 1024, 2 * est)))


# ---------------------------------------------------------------------------
# Kernel 1: M-tiled Linear (+ optional ReLU) — conv front-end matmuls
#   bf16 in / bf16 out, f32 MXU accumulation.
# ---------------------------------------------------------------------------

def _linear_kernel(x_ref, w_ref, b_ref, o_ref, *, relu):
    y = jnp.dot(x_ref[...], w_ref[...], preferred_element_type=jnp.float32)
    y = y + b_ref[...]
    if relu:
        y = jnp.maximum(y, 0.0)
    o_ref[...] = y.astype(o_ref.dtype)


def pallas_linear(x_bf16, w_bf16, b, *, relu=False):
    """x:(M,K) bf16, w:(K,N) bf16, b:(N,) f32 -> (M,N) bf16.  Rows tiled on a parallel axis."""
    M, K = x_bf16.shape
    N = w_bf16.shape[1]
    row_tiles = _choose_row_tiles(M)
    tile = _round_up(pl.cdiv(M, row_tiles), 16)
    Mp = tile * row_tiles
    xp = _pad_rows(x_bf16, Mp)
    out = pl.pallas_call(
        functools.partial(_linear_kernel, relu=relu),
        grid=(row_tiles,),
        in_specs=[pl.BlockSpec((tile, K), lambda i: (i, 0)),
                  pl.BlockSpec((K, N), lambda i: (0, 0)),
                  pl.BlockSpec((1, N), lambda i: (0, 0))],
        out_specs=pl.BlockSpec((tile, N), lambda i: (i, 0)),
        out_shape=jax.ShapeDtypeStruct((Mp, N), jnp.bfloat16),
        compiler_params=pltpu.CompilerParams(dimension_semantics=("parallel",)),
    )(xp, w_bf16, b.reshape(1, N))
    return out[:M]


# ---------------------------------------------------------------------------
# Kernel 2: fused embedding finalize — subsampling Linear + *sqrt(d) + pos-enc + mask
# ---------------------------------------------------------------------------

def _embed_kernel(x_ref, w_ref, b_ref, pe_ref, m_ref, o_ref, *, scale):
    y = jnp.dot(x_ref[0], w_ref[...], preferred_element_type=jnp.float32) + b_ref[...]
    y = y * scale + pe_ref[0]                         # x*sqrt(d) + PE (f32)
    o_ref[0] = (y * m_ref[0]).astype(o_ref.dtype)     # masked_fill(~mask, 0)


def pallas_embed(x_bf16, w_bf16, b, pe, mask_t, scale):
    """x:(B,T,K) bf16, w:(K,d) bf16, pe:(1,T,d) f32, mask_t:(B,T,1) f32 -> (B,T,d) bf16."""
    B, T, K = x_bf16.shape
    d = w_bf16.shape[1]
    return pl.pallas_call(
        functools.partial(_embed_kernel, scale=scale),
        grid=(B,),
        in_specs=[pl.BlockSpec((1, T, K), lambda b_: (b_, 0, 0)),
                  pl.BlockSpec((K, d), lambda b_: (0, 0)),
                  pl.BlockSpec((1, d), lambda b_: (0, 0)),
                  pl.BlockSpec((1, T, d), lambda b_: (0, 0, 0)),
                  pl.BlockSpec((1, T, 1), lambda b_: (b_, 0, 0))],
        out_specs=pl.BlockSpec((1, T, d), lambda b_: (b_, 0, 0)),
        out_shape=jax.ShapeDtypeStruct((B, T, d), jnp.bfloat16),
        compiler_params=pltpu.CompilerParams(dimension_semantics=("parallel",)),
    )(x_bf16, w_bf16, b.reshape(1, d), pe, mask_t)


# ---------------------------------------------------------------------------
# Kernel 3: ONE fused encoder block
#   fused QKV matmul -> per-head softmax attention (additive mask, approx-reciprocal)
#   -> lane-dense ctx -> one output projection -> residual -> LayerNorm1 ->
#   FFN(ReLU) -> residual -> LayerNorm2.   All matmul operands bf16, acc f32.
# ---------------------------------------------------------------------------

def _encoder_block_kernel(x_ref, mask_ref,
                          wqkv_ref, bqkv_ref, wo_ref, bo_ref, g1_ref, be1_ref,
                          w1_ref, b1_ref, w2_ref, b2_ref, g2_ref, be2_ref,
                          o_ref, *, heads, dk, scale, eps):
    d = heads * dk
    xb = x_ref[0]                                  # (T, d) bf16
    x = xb.astype(jnp.float32)
    keymask = mask_ref[0]                          # (1, T) 0/1 f32
    bias = (keymask - 1.0) * 1e30                  # additive mask: 0 keep / -1e30 pad

    # --- fused QKV: one lane-dense (T,d)@(d,3d) matmul + one bias row ---
    qkv = jnp.dot(xb, wqkv_ref[...], preferred_element_type=jnp.float32) + bqkv_ref[...]

    # --- per-head attention on static lane slices of qkv ---
    # TODO(synk): flash-style rewrite at realistic T (q/kv tiling + online-softmax
    #             scratch) so the (T,T) scores never materialize.
    ctx_heads = []
    for h in range(heads):
        q = qkv[:, h * dk:(h + 1) * dk].astype(jnp.bfloat16)
        k = qkv[:, d + h * dk:d + (h + 1) * dk].astype(jnp.bfloat16)
        v = qkv[:, 2 * d + h * dk:2 * d + (h + 1) * dk].astype(jnp.bfloat16)
        s = jnp.einsum('qc,kc->qk', q, k, preferred_element_type=jnp.float32)
        s = s * scale + bias                                                   # (T, T)
        m = jnp.max(s, axis=-1, keepdims=True)
        e = jnp.exp(s - m)
        attn = e * pl.reciprocal(jnp.sum(e, axis=-1, keepdims=True), approx=True)
        attn = attn * keymask          # masked_fill(mask==0, 0.0); covers all-pad rows
        ctx_heads.append(jnp.einsum('qk,kc->qc', attn.astype(jnp.bfloat16), v,
                                    preferred_element_type=jnp.float32))
    ctx = jnp.concatenate(ctx_heads, axis=-1)      # (T, d) lane-dense

    # --- single full-width output projection (bf16 operands, f32 acc) ---
    att = jnp.dot(ctx.astype(jnp.bfloat16), wo_ref[...],
                  preferred_element_type=jnp.float32) + bo_ref[...]

    y = x + att                                    # residual (dropout = identity, eval)

    # --- LayerNorm 1 (f32) ---
    mean = jnp.mean(y, axis=-1, keepdims=True)
    yc = y - mean
    var = jnp.mean(yc * yc, axis=-1, keepdims=True)
    x1 = yc * jax.lax.rsqrt(var + eps) * g1_ref[...] + be1_ref[...]

    # --- position-wise FFN ---
    h1 = jnp.dot(x1.astype(jnp.bfloat16), w1_ref[...], preferred_element_type=jnp.float32)
    h1 = jnp.maximum(h1 + b1_ref[...], 0.0)
    ff = jnp.dot(h1.astype(jnp.bfloat16), w2_ref[...], preferred_element_type=jnp.float32)
    y2 = x1 + ff + b2_ref[...]                     # residual (dropout = identity, eval)

    # --- LayerNorm 2 (f32) ---
    mean2 = jnp.mean(y2, axis=-1, keepdims=True)
    yc2 = y2 - mean2
    var2 = jnp.mean(yc2 * yc2, axis=-1, keepdims=True)
    out = yc2 * jax.lax.rsqrt(var2 + eps) * g2_ref[...] + be2_ref[...]
    o_ref[0] = out.astype(o_ref.dtype)


def pallas_encoder_block(x, mask, blk, *, heads, dk, eps=1e-5, vmem_limit=None):
    B, T, d = x.shape
    lu = blk['w1'].shape[1]
    scale = 1.0 / math.sqrt(dk)
    kern = functools.partial(_encoder_block_kernel,
                             heads=heads, dk=dk, scale=scale, eps=eps)

    def rep(shape):  # weight/bias replicated across the batch grid axis
        return pl.BlockSpec(shape, lambda b_: (0, 0))

    return pl.pallas_call(
        kern,
        grid=(B,),
        in_specs=[pl.BlockSpec((1, T, d), lambda b_: (b_, 0, 0)),   # x (bf16)
                  pl.BlockSpec((1, 1, T), lambda b_: (b_, 0, 0)),   # key mask (0/1 f32)
                  rep((d, 3 * d)),                                  # Wq|Wk|Wv fused (bf16)
                  rep((1, 3 * d)),                                  # bq|bk|bv fused (f32)
                  rep((d, d)), rep((1, d)),                         # Wo (bf16), bo
                  rep((1, d)), rep((1, d)),                         # LN1 gamma, beta
                  rep((d, lu)), rep((1, lu)),                       # W1 (bf16), b1
                  rep((lu, d)), rep((1, d)),                        # W2 (bf16), b2
                  rep((1, d)), rep((1, d))],                        # LN2 gamma, beta
        out_specs=pl.BlockSpec((1, T, d), lambda b_: (b_, 0, 0)),
        out_shape=jax.ShapeDtypeStruct((B, T, d), jnp.bfloat16),
        compiler_params=pltpu.CompilerParams(
            dimension_semantics=("parallel",),
            vmem_limit_bytes=vmem_limit),
    )(x, mask,
      blk['wqkv'], blk['bqkv'], blk['wo'], blk['bo'],
      blk['ln1_g'], blk['ln1_b'],
      blk['w1'], blk['b1'], blk['w2'], blk['b2'],
      blk['ln2_g'], blk['ln2_b'])


# ---------------------------------------------------------------------------
# Kernel 4: fused classifier — Linear + bias + LogSoftmax (logits stay in VMEM)
# ---------------------------------------------------------------------------

def _classifier_kernel(x_ref, w_ref, b_ref, o_ref):
    y = jnp.dot(x_ref[...], w_ref[...], preferred_element_type=jnp.float32) + b_ref[...]
    m = jnp.max(y, axis=-1, keepdims=True)
    s = y - m
    lse = jnp.log(jnp.sum(jnp.exp(s), axis=-1, keepdims=True))
    o_ref[...] = s - lse


def pallas_classifier(x_bf16, w_bf16, b):
    M, K = x_bf16.shape
    V = w_bf16.shape[1]
    row_tiles = _choose_row_tiles(M)
    tile = _round_up(pl.cdiv(M, row_tiles), 16)
    Mp = tile * row_tiles
    # padded rows are zeros -> bias-only logits -> finite log-softmax, sliced off below
    xp = _pad_rows(x_bf16, Mp)
    out = pl.pallas_call(
        _classifier_kernel,
        grid=(row_tiles,),
        in_specs=[pl.BlockSpec((tile, K), lambda i: (i, 0)),
                  pl.BlockSpec((K, V), lambda i: (0, 0)),
                  pl.BlockSpec((1, V), lambda i: (0, 0))],
        out_specs=pl.BlockSpec((tile, V), lambda i: (i, 0)),
        out_shape=jax.ShapeDtypeStruct((Mp, V), jnp.float32),
        compiler_params=pltpu.CompilerParams(dimension_semantics=("parallel",)),
    )(xp, w_bf16, b.reshape(1, V))
    return out[:M]


# ---------------------------------------------------------------------------
# Plain-JAX glue (im2col patch extraction, positional encoding)
# ---------------------------------------------------------------------------

def im2col(x, k=3, s=2):
    """x: (B,H,W,C) -> (B,Ho,Wo,k*k*C) patches (kernel positions outer, C inner)."""
    # TODO(synk): fold this into the conv matmul via a strided/Element index_map so
    #             the 9x patches are never materialized in HBM.
    B, H, W, C = x.shape
    Ho = (H - k) // s + 1
    Wo = (W - k) // s + 1
    patches = []
    for i in range(k):
        for j in range(k):
            patches.append(x[:, i:i + s * Ho:s, j:j + s * Wo:s, :])
    return jnp.concatenate(patches, axis=-1), Ho, Wo


def positional_encoding(T, d):
    pos = jnp.arange(T, dtype=jnp.float32)[:, None]
    div = jnp.exp(jnp.arange(0, d, 2, dtype=jnp.float32) * (-math.log(10000.0) / d))
    pe = jnp.zeros((T, d), jnp.float32)
    pe = pe.at[:, 0::2].set(jnp.sin(pos * div))
    pe = pe.at[:, 1::2].set(jnp.cos(pos * div))
    return pe


# ---------------------------------------------------------------------------
# Parameters (synthetic init in the "PyTorch" layout) + packing to kernel layout
# ---------------------------------------------------------------------------

def init_params(key, cfg):
    F, d, nb, lu, V = (cfg['input_size'], cfg['d_model'], cfg['num_blocks'],
                       cfg['linear_units'], cfg['vocab'])
    F1 = (F - 3) // 2 + 1
    F2 = (F1 - 3) // 2 + 1
    keys = iter(jax.random.split(key, 8 + 8 * nb))

    def w(shape, scale=0.02):
        return scale * jax.random.normal(next(keys), shape, dtype=jnp.float32)

    p = {
        'conv1_w': w((9 * 1, d)), 'conv1_b': jnp.zeros((d,), jnp.float32),
        'conv2_w': w((9 * d, d)), 'conv2_b': jnp.zeros((d,), jnp.float32),
        'embed_lin_w': w((F2 * d, d)), 'embed_lin_b': jnp.zeros((d,), jnp.float32),
        'liner_w': w((d, V)), 'liner_b': jnp.zeros((V,), jnp.float32),
        'blocks': [],
    }
    for _ in range(nb):
        p['blocks'].append({
            'wq': w((d, d)), 'bq': jnp.zeros((d,), jnp.float32),
            'wk': w((d, d)), 'bk': jnp.zeros((d,), jnp.float32),
            'wv': w((d, d)), 'bv': jnp.zeros((d,), jnp.float32),
            'wo': w((d, d)), 'bo': jnp.zeros((d,), jnp.float32),
            'ln1_g': jnp.ones((d,), jnp.float32), 'ln1_b': jnp.zeros((d,), jnp.float32),
            'w1': w((d, lu)), 'b1': jnp.zeros((lu,), jnp.float32),
            'w2': w((lu, d)), 'b2': jnp.zeros((d,), jnp.float32),
            'ln2_g': jnp.ones((d,), jnp.float32), 'ln2_b': jnp.zeros((d,), jnp.float32),
        })
    return p


def pack_params(p, cfg):
    """Repack weights for the fused kernels: lane-dense fused QKV, bf16 matmul operands."""
    d = cfg['d_model']
    packed = {
        'conv1_w': p['conv1_w'].astype(jnp.bfloat16), 'conv1_b': p['conv1_b'],
        'conv2_w': p['conv2_w'].astype(jnp.bfloat16), 'conv2_b': p['conv2_b'],
        'embed_lin_w': p['embed_lin_w'].astype(jnp.bfloat16), 'embed_lin_b': p['embed_lin_b'],
        'liner_w': p['liner_w'].astype(jnp.bfloat16), 'liner_b': p['liner_b'],
        'blocks': [],
    }
    for blk in p['blocks']:
        packed['blocks'].append({
            # fused lane-dense QKV weight (d, 3d) bf16 + single (1, 3d) bias row
            'wqkv': jnp.concatenate([blk['wq'], blk['wk'], blk['wv']],
                                    axis=1).astype(jnp.bfloat16),
            'bqkv': jnp.concatenate([blk['bq'], blk['bk'], blk['bv']]).reshape(1, 3 * d),
            'wo': blk['wo'].astype(jnp.bfloat16),
            'bo': blk['bo'].reshape(1, d),
            'ln1_g': blk['ln1_g'].reshape(1, d), 'ln1_b': blk['ln1_b'].reshape(1, d),
            'w1': blk['w1'].astype(jnp.bfloat16), 'b1': blk['b1'].reshape(1, -1),
            'w2': blk['w2'].astype(jnp.bfloat16), 'b2': blk['b2'].reshape(1, d),
            'ln2_g': blk['ln2_g'].reshape(1, d), 'ln2_b': blk['ln2_b'].reshape(1, d),
        })
    return packed


# ---------------------------------------------------------------------------
# Forward pass (mirrors speech_model.forward, eval mode: dropout = identity)
# ---------------------------------------------------------------------------

def speech_model_forward(params, inputs, cfg):
    B, T, F = inputs.shape
    d, H = cfg['d_model'], cfg['heads']
    dk = d // H

    # enc_mask = sum(inputs, -1).ne(0).unsqueeze(-2) -> (B, 1, T) float 0/1  (on f32 inputs)
    enc_mask = (jnp.sum(inputs, axis=-1) != 0).astype(jnp.float32)[:, None, :]

    # --- fesubsampling: two conv3x3/s2 + ReLU (bf16 im2col + M-tiled matmul kernels) ---
    x = inputs.astype(jnp.bfloat16)[..., None]                  # (B, T, F, 1) bf16
    cols1, T1, F1 = im2col(x)
    h1 = pallas_linear(cols1.reshape(-1, cols1.shape[-1]),
                       params['conv1_w'], params['conv1_b'], relu=True)
    h1 = h1.reshape(B, T1, F1, d)                               # bf16
    cols2, T2, F2 = im2col(h1)
    h2 = pallas_linear(cols2.reshape(-1, cols2.shape[-1]),
                       params['conv2_w'], params['conv2_b'], relu=True)
    h2 = h2.reshape(B, T2, F2 * d)                              # bf16

    # subsampled mask: mask[:, :, :-2:2][:, :, :-2:2] -> (B, 1, T2)
    m = enc_mask[:, :, :-2:2][:, :, :-2:2]
    mask_t = jnp.transpose(m, (0, 2, 1))                        # (B, T2, 1)
    pe = positional_encoding(T2, d)[None]                       # (1, T2, d)

    # fused: Linear + *sqrt(d) + pos-enc + masked_fill(~mask, 0)
    x = pallas_embed(h2, params['embed_lin_w'], params['embed_lin_b'],
                     pe, mask_t, math.sqrt(d))                  # (B, T2, d) bf16

    # --- transformer encoder: one fused kernel per block ---
    vmem_limit = _encoder_block_vmem_limit(T2, d, cfg['linear_units'], H)
    for blk in params['blocks']:
        x = pallas_encoder_block(x, m, blk, heads=H, dk=dk, vmem_limit=vmem_limit)

    # liner(enc_output.transpose(0,1)) + LogSoftmax(dim=2)
    # TODO(synk): fold this transpose into the classifier out_spec index_map at scale.
    xt = jnp.transpose(x, (1, 0, 2)).reshape(T2 * B, d)         # bf16
    logp = pallas_classifier(xt, params['liner_w'], params['liner_b'])
    return logp.reshape(T2, B, cfg['vocab'])


# ---------------------------------------------------------------------------
# Main
# ---------------------------------------------------------------------------

if __name__ == "__main__":
    cfg = dict(input_size=16, d_model=32, heads=4,
               linear_units=64, num_blocks=2, vocab=64)
    assert cfg['d_model'] % cfg['heads'] == 0
    assert cfg['d_model'] % 2 == 0          # sinusoidal pos-enc requires even d_model

    key = jax.random.PRNGKey(0)
    k_param, k_in = jax.random.split(key)
    params = pack_params(init_params(k_param, cfg), cfg)

    B, T, F = 2, 16, cfg['input_size']
    inputs = jax.random.normal(k_in, (B, T, F), dtype=jnp.float32)
    # zero-pad the tail of the second utterance so the mask path is exercised
    inputs = inputs.at[1, 6:, :].set(0.0)

    forward = jax.jit(lambda p, x: speech_model_forward(p, x, cfg))
    out = jax.block_until_ready(forward(params, inputs))

    # sanity: output is (T', B, vocab) log-probs; each row sums to ~1 in prob space
    T2 = out.shape[0]
    probs_sum = jnp.sum(jnp.exp(out), axis=-1)
    assert out.shape == (T2, B, cfg['vocab'])
    assert bool(jnp.all(jnp.isfinite(out)))
    assert bool(jnp.all(jnp.abs(probs_sum - 1.0) < 1e-3))

    print("KERNEL_OK")
</pallas_src>

<mosaic_0001>
module attributes {stable_mosaic.version = 11 : i64} {
  func.func @_linear_kernel(%arg0: i32, %arg1: memref<64x9xbf16, #tpu.memory_space<vmem>>, %arg2: memref<9x32xbf16, #tpu.memory_space<vmem>>, %arg3: memref<1x32xf32, #tpu.memory_space<vmem>>, %arg4: memref<64x32xbf16, #tpu.memory_space<vmem>>) attributes {dimension_semantics = [#tpu.dimension_semantics<parallel>], iteration_bounds = array<i64: 2>, scalar_prefetch = 0 : i64, scratch_operands = 0 : i64, tpu.core_type = #tpu.core_type<tc>, window_params = [{transform_indices = @transform_0, window_bounds = array<i64: 64, 9>}, {pipeline_mode = #tpu.pipeline_mode<synchronous>, transform_indices = @transform_1, window_bounds = array<i64: 9, 32>}, {pipeline_mode = #tpu.pipeline_mode<synchronous>, transform_indices = @transform_2, window_bounds = array<i64: 1, 32>}, {transform_indices = @transform_3, window_bounds = array<i64: 64, 32>}]} {
    %c0 = arith.constant 0 : index
    %c0_0 = arith.constant 0 : index
    %0 = vector.load %arg1[%c0, %c0_0] : memref<64x9xbf16, #tpu.memory_space<vmem>>, vector<64x9xbf16>
    %c0_1 = arith.constant 0 : index
    %c0_2 = arith.constant 0 : index
    %1 = vector.load %arg2[%c0_1, %c0_2] : memref<9x32xbf16, #tpu.memory_space<vmem>>, vector<9x32xbf16>
    %cst = arith.constant dense<0.000000e+00> : vector<64x32xf32>
    %2 = tpu.matmul %0, %1, %cst {dimension_numbers = #tpu.dot_dimension_numbers<[1], [0], [0], [1], [0, 0, 1, 1], [], []>} : vector<64x9xbf16>, vector<9x32xbf16>, vector<64x32xf32> -> vector<64x32xf32>
    %c0_3 = arith.constant 0 : index
    %c0_4 = arith.constant 0 : index
    %3 = vector.load %arg3[%c0_3, %c0_4] : memref<1x32xf32, #tpu.memory_space<vmem>>, vector<1x32xf32>
    %4 = vector.broadcast %3 : vector<1x32xf32> to vector<64x32xf32>
    %5 = arith.addf %2, %4 : vector<64x32xf32>
    %cst_5 = arith.constant 0.000000e+00 : f32
    %6 = vector.broadcast %cst_5 : f32 to vector<64x32xf32>
    %7 = arith.maximumf %5, %6 : vector<64x32xf32>
    %8 = arith.truncf %7 : vector<64x32xf32> to vector<64x32xbf16>
    %c0_6 = arith.constant 0 : index
    %c0_7 = arith.constant 0 : index
    %9 = vector.load %arg4[%c0_6, %c0_7] : memref<64x32xbf16, #tpu.memory_space<vmem>>, vector<64x32xbf16>
    tpu.vector_store %arg4[%c0_6, %c0_7], %8 {strides = array<i32>} : memref<64x32xbf16, #tpu.memory_space<vmem>>, vector<64x32xbf16>,
    return
  }
  func.func @transform_0(%arg0: i32) -> (i32, i32) {
    %c0_i32 = arith.constant 0 : i32
    %c0_i32_0 = arith.constant 0 : i32
    return %arg0, %c0_i32 : i32, i32
  }
  func.func @transform_1(%arg0: i32) -> (i32, i32) {
    %c0_i32 = arith.constant 0 : i32
    %c0_i32_0 = arith.constant 0 : i32
    %c0_i32_1 = arith.constant 0 : i32
    return %c0_i32, %c0_i32_0 : i32, i32
  }
  func.func @transform_2(%arg0: i32) -> (i32, i32) {
    %c0_i32 = arith.constant 0 : i32
    %c0_i32_0 = arith.constant 0 : i32
    %c0_i32_1 = arith.constant 0 : i32
    return %c0_i32, %c0_i32_0 : i32, i32
  }
  func.func @transform_3(%arg0: i32) -> (i32, i32) {
    %c0_i32 = arith.constant 0 : i32
    %c0_i32_0 = arith.constant 0 : i32
    return %arg0, %c0_i32 : i32, i32
  }
}

module attributes {stable_mosaic.version = 11 : i64} {
  func.func @_linear_kernel(%arg0: i32, %arg1: memref<16x288xbf16, #tpu.memory_space<vmem>>, %arg2: memref<288x32xbf16, #tpu.memory_space<vmem>>, %arg3: memref<1x32xf32, #tpu.memory_space<vmem>>, %arg4: memref<16x32xbf16, #tpu.memory_space<vmem>>) attributes {dimension_semantics = [#tpu.dimension_semantics<parallel>], iteration_bounds = array<i64: 2>, scalar_prefetch = 0 : i64, scratch_operands = 0 : i64, tpu.core_type = #tpu.core_type<tc>, window_params = [{transform_indices = @transform_0, window_bounds = array<i64: 16, 288>}, {pipeline_mode = #tpu.pipeline_mode<synchronous>, transform_indices = @transform_1, window_bounds = array<i64: 288, 32>}, {pipeline_mode = #tpu.pipeline_mode<synchronous>, transform_indices = @transform_2, window_bounds = array<i64: 1, 32>}, {transform_indices = @transform_3, window_bounds = array<i64: 16, 32>}]} {
    %c0 = arith.constant 0 : index
    %c0_0 = arith.constant 0 : index
    %0 = vector.load %arg1[%c0, %c0_0] : memref<16x288xbf16, #tpu.memory_space<vmem>>, vector<16x288xbf16>
    %c0_1 = arith.constant 0 : index
    %c0_2 = arith.constant 0 : index
    %1 = vector.load %arg2[%c0_1, %c0_2] : memref<288x32xbf16, #tpu.memory_space<vmem>>, vector<288x32xbf16>
    %cst = arith.constant dense<0.000000e+00> : vector<16x32xf32>
    %2 = tpu.matmul %0, %1, %cst {dimension_numbers = #tpu.dot_dimension_numbers<[1], [0], [0], [1], [0, 0, 1, 1], [], []>} : vector<16x288xbf16>, vector<288x32xbf16>, vector<16x32xf32> -> vector<16x32xf32>
    %c0_3 = arith.constant 0 : index
    %c0_4 = arith.constant 0 : index
    %3 = vector.load %arg3[%c0_3, %c0_4] : memref<1x32xf32, #tpu.memory_space<vmem>>, vector<1x32xf32>
    %4 = vector.broadcast %3 : vector<1x32xf32> to vector<16x32xf32>
    %5 = arith.addf %2, %4 : vector<16x32xf32>
    %cst_5 = arith.constant 0.000000e+00 : f32
    %6 = vector.broadcast %cst_5 : f32 to vector<16x32xf32>
    %7 = arith.maximumf %5, %6 : vector<16x32xf32>
    %8 = arith.truncf %7 : vector<16x32xf32> to vector<16x32xbf16>
    %c0_6 = arith.constant 0 : index
    %c0_7 = arith.constant 0 : index
    %9 = vector.load %arg4[%c0_6, %c0_7] : memref<16x32xbf16, #tpu.memory_space<vmem>>, vector<16x32xbf16>
    tpu.vector_store %arg4[%c0_6, %c0_7], %8 {strides = array<i32>} : memref<16x32xbf16, #tpu.memory_space<vmem>>, vector<16x32xbf16>,
    return
  }
  func.func @transform_0(%arg0: i32) -> (i32, i32) {
    %c0_i32 = arith.constant 0 : i32
    %c0_i32_0 = arith.constant 0 : i32
    return %arg0, %c0_i32 : i32, i32
  }
  func.func @transform_1(%arg0: i32) -> (i32, i32) {
    %c0_i32 = arith.constant 0 : i32
    %c0_i32_0 = arith.constant 0 : i32
    %c0_i32_1 = arith.constant 0 : i32
    return %c0_i32, %c0_i32_0 : i32, i32
  }
  func.func @transform_2(%arg0: i32) -> (i32, i32) {
    %c0_i32 = arith.constant 0 : i32
    %c0_i32_0 = arith.constant 0 : i32
    %c0_i32_1 = arith.constant 0 : i32
    return %c0_i32, %c0_i32_0 : i32, i32
  }
  func.func @transform_3(%arg0: i32) -> (i32, i32) {
    %c0_i32 = arith.constant 0 : i32
    %c0_i32_0 = arith.constant 0 : i32
    return %arg0, %c0_i32 : i32, i32
  }
}

module attributes {stable_mosaic.version = 11 : i64} {
  func.func @_encoder_block_kernel(%arg0: i32, %arg1: memref<1x3x32xbf16, #tpu.memory_space<vmem>>, %arg2: memref<1x1x3xf32, #tpu.memory_space<vmem>>, %arg3: memref<32x96xbf16, #tpu.memory_space<vmem>>, %arg4: memref<1x96xf32, #tpu.memory_space<vmem>>, %arg5: memref<32x32xbf16, #tpu.memory_space<vmem>>, %arg6: memref<1x32xf32, #tpu.memory_space<vmem>>, %arg7: memref<1x32xf32, #tpu.memory_space<vmem>>, %arg8: memref<1x32xf32, #tpu.memory_space<vmem>>, %arg9: memref<32x64xbf16, #tpu.memory_space<vmem>>, %arg10: memref<1x64xf32, #tpu.memory_space<vmem>>, %arg11: memref<64x32xbf16, #tpu.memory_space<vmem>>, %arg12: memref<1x32xf32, #tpu.memory_space<vmem>>, %arg13: memref<1x32xf32, #tpu.memory_space<vmem>>, %arg14: memref<1x32xf32, #tpu.memory_space<vmem>>, %arg15: memref<1x3x32xbf16, #tpu.memory_space<vmem>>) attributes {dimension_semantics = [#tpu.dimension_semantics<parallel>], iteration_bounds = array<i64: 2>, scalar_prefetch = 0 : i64, scratch_operands = 0 : i64, tpu.core_type = #tpu.core_type<tc>, window_params = [{transform_indices = @transform_0, window_bounds = array<i64: 1, 3, 32>}, {transform_indices = @transform_1, window_bounds = array<i64: 1, 1, 3>}, {pipeline_mode = #tpu.pipeline_mode<synchronous>, transform_indices = @transform_2, window_bounds = array<i64: 32, 96>}, {pipeline_mode = #tpu.pipeline_mode<synchronous>, transform_indices = @transform_3, window_bounds = array<i64: 1, 96>}, {pipeline_mode = #tpu.pipeline_mode<synchronous>, transform_indices = @transform_4, window_bounds = array<i64: 32, 32>}, {pipeline_mode = #tpu.pipeline_mode<synchronous>, transform_indices = @transform_5, window_bounds = array<i64: 1, 32>}, {pipeline_mode = #tpu.pipeline_mode<synchronous>, transform_indices = @transform_6, window_bounds = array<i64: 1, 32>}, {pipeline_mode = #tpu.pipeline_mode<synchronous>, transform_indices = @transform_7, window_bounds = array<i64: 1, 32>}, {pipeline_mode = #tpu.pipeline_mode<synchronous>, transform_indices = @transform_8, window_bounds = array<i64: 32, 64>}, {pipeline_mode = #tpu.pipeline_mode<synchronous>, transform_indices = @transform_9, window_bounds = array<i64: 1, 64>}, {pipeline_mode = #tpu.pipeline_mode<synchronous>, transform_indices = @transform_10, window_bounds = array<i64: 64, 32>}, {pipeline_mode = #tpu.pipeline_mode<synchronous>, transform_indices = @transform_11, window_bounds = array<i64: 1, 32>}, {pipeline_mode = #tpu.pipeline_mode<synchronous>, transform_indices = @transform_12, window_bounds = array<i64: 1, 32>}, {pipeline_mode = #tpu.pipeline_mode<synchronous>, transform_indices = @transform_13, window_bounds = array<i64: 1, 32>}, {transform_indices = @transform_14, window_bounds = array<i64: 1, 3, 32>}]} {
    %c0 = arith.constant 0 : index
    %c0_0 = arith.constant 0 : index
    %c0_1 = arith.constant 0 : index
    %0 = vector.load %arg1[%c0, %c0_0, %c0_1] : memref<1x3x32xbf16, #tpu.memory_space<vmem>>, vector<1x3x32xbf16>
    %1 = vector.shape_cast %0 : vector<1x3x32xbf16> to vector<3x32xbf16>
    %2 = arith.extf %1 : vector<3x32xbf16> to vector<3x32xf32>
    %c0_2 = arith.constant 0 : index
    %c0_3 = arith.constant 0 : index
    %c0_4 = arith.constant 0 : index
    %3 = vector.load %arg2[%c0_2, %c0_3, %c0_4] : memref<1x1x3xf32, #tpu.memory_space<vmem>>, vector<1x1x3xf32>
    %4 = vector.shape_cast %3 : vector<1x1x3xf32> to vector<1x3xf32>
    %cst = arith.constant 1.000000e+00 : f32
    %5 = vector.broadcast %cst : f32 to vector<1x3xf32>
    %6 = arith.subf %4, %5 : vector<1x3xf32>
    %cst_5 = arith.constant 1.000000e+30 : f32
    %7 = vector.broadcast %cst_5 : f32 to vector<1x3xf32>
    %8 = arith.mulf %6, %7 : vector<1x3xf32>
    %c0_6 = arith.constant 0 : index
    %c0_7 = arith.constant 0 : index
    %9 = vector.load %arg3[%c0_6, %c0_7] : memref<32x96xbf16, #tpu.memory_space<vmem>>, vector<32x96xbf16>
    %cst_8 = arith.constant dense<0.000000e+00> : vector<3x96xf32>
    %10 = tpu.matmul %1, %9, %cst_8 {dimension_numbers = #tpu.dot_dimension_numbers<[1], [0], [0], [1], [0, 0, 1, 1], [], []>} : vector<3x32xbf16>, vector<32x96xbf16>, vector<3x96xf32> -> vector<3x96xf32>
    %c0_9 = arith.constant 0 : index
    %c0_10 = arith.constant 0 : index
    %11 = vector.load %arg4[%c0_9, %c0_10] : memref<1x96xf32, #tpu.memory_space<vmem>>, vector<1x96xf32>
    %12 = vector.broadcast %11 : vector<1x96xf32> to vector<3x96xf32>
    %13 = arith.addf %10, %12 : vector<3x96xf32>
    %14 = vector.extract_strided_slice %13 {offsets = [0, 0], sizes = [3, 8], strides = [1, 1]} : vector<3x96xf32> to vector<3x8xf32>
    %15 = arith.truncf %14 : vector<3x8xf32> to vector<3x8xbf16>
    %16 = vector.extract_strided_slice %13 {offsets = [0, 32], sizes = [3, 8], strides = [1, 1]} : vector<3x96xf32> to vector<3x8xf32>
    %17 = arith.truncf %16 : vector<3x8xf32> to vector<3x8xbf16>
    %18 = vector.extract_strided_slice %13 {offsets = [0, 64], sizes = [3, 8], strides = [1, 1]} : vector<3x96xf32> to vector<3x8xf32>
    %19 = arith.truncf %18 : vector<3x8xf32> to vector<3x8xbf16>
    "tpu.trace_start"() <{level = 10 : i32, message = "qc,kc->qk"}> : () -> ()
    %cst_11 = arith.constant dense<0.000000e+00> : vector<3x3xf32>
    %20 = tpu.matmul %15, %17, %cst_11 {dimension_numbers = #tpu.dot_dimension_numbers<[1], [1], [0], [0], [0, 0, 1, 0], [], []>} : vector<3x8xbf16>, vector<3x8xbf16>, vector<3x3xf32> -> vector<3x3xf32>
    "tpu.trace_stop"() : () -> ()
    %cst_12 = arith.constant 0.353553385 : f32
    %21 = vector.broadcast %cst_12 : f32 to vector<3x3xf32>
    %22 = arith.mulf %20, %21 : vector<3x3xf32>
    %23 = vector.broadcast %8 : vector<1x3xf32> to vector<3x3xf32>
    %24 = arith.addf %22, %23 : vector<3x3xf32>
    %cst_13 = arith.constant dense<0xFF800000> : vector<3xf32>
    %25 = vector.multi_reduction <maximumf>, %24, %cst_13 [1] : vector<3x3xf32> to vector<3xf32>
    %26 = vector.shape_cast %25 : vector<3xf32> to vector<3x1xf32>
    %27 = vector.broadcast %26 : vector<3x1xf32> to vector<3x3xf32>
    %28 = arith.subf %24, %27 : vector<3x3xf32>
    %29 = math.exp %28 : vector<3x3xf32>
    %cst_14 = arith.constant dense<0.000000e+00> : vector<3xf32>
    %30 = vector.multi_reduction <add>, %29, %cst_14 [1] : vector<3x3xf32> to vector<3xf32>
    %31 = vector.shape_cast %30 : vector<3xf32> to vector<3x1xf32>
    %32 = tpu.reciprocal %31 {approx = true} : vector<3x1xf32> -> vector<3x1xf32>
    %33 = vector.broadcast %32 : vector<3x1xf32> to vector<3x3xf32>
    %34 = arith.mulf %29, %33 : vector<3x3xf32>
    %35 = vector.broadcast %4 : vector<1x3xf32> to vector<3x3xf32>
    %36 = arith.mulf %34, %35 : vector<3x3xf32>
    %37 = arith.truncf %36 : vector<3x3xf32> to vector<3x3xbf16>
    "tpu.trace_start"() <{level = 10 : i32, message = "qk,kc->qc"}> : () -> ()
    %cst_15 = arith.constant dense<0.000000e+00> : vector<3x8xf32>
    %38 = tpu.matmul %37, %19, %cst_15 {dimension_numbers = #tpu.dot_dimension_numbers<[1], [0], [0], [1], [0, 0, 1, 1], [], []>} : vector<3x3xbf16>, vector<3x8xbf16>, vector<3x8xf32> -> vector<3x8xf32>
    "tpu.trace_stop"() : () -> ()
    %39 = vector.extract_strided_slice %13 {offsets = [0, 8], sizes = [3, 8], strides = [1, 1]} : vector<3x96xf32> to vector<3x8xf32>
    %40 = arith.truncf %39 : vector<3x8xf32> to vector<3x8xbf16>
    %41 = vector.extract_strided_slice %13 {offsets = [0, 40], sizes = [3, 8], strides = [1, 1]} : vector<3x96xf32> to vector<3x8xf32>
    %42 = arith.truncf %41 : vector<3x8xf32> to vector<3x8xbf16>
    %43 = vector.extract_strided_slice %13 {offsets = [0, 72], sizes = [3, 8], strides = [1, 1]} : vector<3x96xf32> to vector<3x8xf32>
    %44 = arith.truncf %43 : vector<3x8xf32> to vector<3x8xbf16>
    "tpu.trace_start"() <{level = 10 : i32, message = "qc,kc->qk"}> : () -> ()
    %cst_16 = arith.constant dense<0.000000e+00> : vector<3x3xf32>
    %45 = tpu.matmul %40, %42, %cst_16 {dimension_numbers = #tpu.dot_dimension_numbers<[1], [1], [0], [0], [0, 0, 1, 0], [], []>} : vector<3x8xbf16>, vector<3x8xbf16>, vector<3x3xf32> -> vector<3x3xf32>
    "tpu.trace_stop"() : () -> ()
    %cst_17 = arith.constant 0.353553385 : f32
    %46 = vector.broadcast %cst_17 : f32 to vector<3x3xf32>
    %47 = arith.mulf %45, %46 : vector<3x3xf32>
    %48 = vector.broadcast %8 : vector<1x3xf32> to vector<3x3xf32>
    %49 = arith.addf %47, %48 : vector<3x3xf32>
    %cst_18 = arith.constant dense<0xFF800000> : vector<3xf32>
    %50 = vector.multi_reduction <maximumf>, %49, %cst_18 [1] : vector<3x3xf32> to vector<3xf32>
    %51 = vector.shape_cast %50 : vector<3xf32> to vector<3x1xf32>
    %52 = vector.broadcast %51 : vector<3x1xf32> to vector<3x3xf32>
    %53 = arith.subf %49, %52 : vector<3x3xf32>
    %54 = math.exp %53 : vector<3x3xf32>
    %cst_19 = arith.constant dense<0.000000e+00> : vector<3xf32>
    %55 = vector.multi_reduction <add>, %54, %cst_19 [1] : vector<3x3xf32> to vector<3xf32>
    %56 = vector.shape_cast %55 : vector<3xf32> to vector<3x1xf32>
    %57 = tpu.reciprocal %56 {approx = true} : vector<3x1xf32> -> vector<3x1xf32>
    %58 = vector.broadcast %57 : vector<3x1xf32> to vector<3x3xf32>
    %59 = arith.mulf %54, %58 : vector<3x3xf32>
    %60 = vector.broadcast %4 : vector<1x3xf32> to vector<3x3xf32>
    %61 = arith.mulf %59, %60 : vector<3x3xf32>
    %62 = arith.truncf %61 : vector<3x3xf32> to vector<3x3xbf16>
    "tpu.trace_start"() <{level = 10 : i32, message = "qk,kc->qc"}> : () -> ()
    %cst_20 = arith.constant dense<0.000000e+00> : vector<3x8xf32>
    %63 = tpu.matmul %62, %44, %cst_20 {dimension_numbers = #tpu.dot_dimension_numbers<[1], [0], [0], [1], [0, 0, 1, 1], [], []>} : vector<3x3xbf16>, vector<3x8xbf16>, vector<3x8xf32> -> vector<3x8xf32>
    "tpu.trace_stop"() : () -> ()
    %64 = vector.extract_strided_slice %13 {offsets = [0, 16], sizes = [3, 8], strides = [1, 1]} : vector<3x96xf32> to vector<3x8xf32>
    %65 = arith.truncf %64 : vector<3x8xf32> to vector<3x8xbf16>
    %66 = vector.extract_strided_slice %13 {offsets = [0, 48], sizes = [3, 8], strides = [1, 1]} : vector<3x96xf32> to vector<3x8xf32>
    %67 = arith.truncf %66 : vector<3x8xf32> to vector<3x8xbf16>
    %68 = vector.extract_strided_slice %13 {offsets = [0, 80], sizes = [3, 8], strides = [1, 1]} : vector<3x96xf32> to vector<3x8xf32>
    %69 = arith.truncf %68 : vector<3x8xf32> to vector<3x8xbf16>
    "tpu.trace_start"() <{level = 10 : i32, message = "qc,kc->qk"}> : () -> ()
    %cst_21 = arith.constant dense<0.000000e+00> : vector<3x3xf32>
    %70 = tpu.matmul %65, %67, %cst_21 {dimension_numbers = #tpu.dot_dimension_numbers<[1], [1], [0], [0], [0, 0, 1, 0], [], []>} : vector<3x8xbf16>, vector<3x8xbf16>, vector<3x3xf32> -> vector<3x3xf32>
    "tpu.trace_stop"() : () -> ()
    %cst_22 = arith.constant 0.353553385 : f32
    %71 = vector.broadcast %cst_22 : f32 to vector<3x3xf32>
    %72 = arith.mulf %70, %71 : vector<3x3xf32>
    %73 = vector.broadcast %8 : vector<1x3xf32> to vector<3x3xf32>
    %74 = arith.addf %72, %73 : vector<3x3xf32>
    %cst_23 = arith.constant dense<0xFF800000> : vector<3xf32>
    %75 = vector.multi_reduction <maximumf>, %74, %cst_23 [1] : vector<3x3xf32> to vector<3xf32>
    %76 = vector.shape_cast %75 : vector<3xf32> to vector<3x1xf32>
    %77 = vector.broadcast %76 : vector<3x1xf32> to vector<3x3xf32>
    %78 = arith.subf %74, %77 : vector<3x3xf32>
    %79 = math.exp %78 : vector<3x3xf32>
    %cst_24 = arith.constant dense<0.000000e+00> : vector<3xf32>
    %80 = vector.multi_reduction <add>, %79, %cst_24 [1] : vector<3x3xf32> to vector<3xf32>
    %81 = vector.shape_cast %80 : vector<3xf32> to vector<3x1xf32>
    %82 = tpu.reciprocal %81 {approx = true} : vector<3x1xf32> -> vector<3x1xf32>
    %83 = vector.broadcast %82 : vector<3x1xf32> to vector<3x3xf32>
    %84 = arith.mulf %79, %83 : vector<3x3xf32>
    %85 = vector.broadcast %4 : vector<1x3xf32> to vector<3x3xf32>
    %86 = arith.mulf %84, %85 : vector<3x3xf32>
    %87 = arith.truncf %86 : vector<3x3xf32> to vector<3x3xbf16>
    "tpu.trace_start"() <{level = 10 : i32, message = "qk,kc->qc"}> : () -> ()
    %cst_25 = arith.constant dense<0.000000e+00> : vector<3x8xf32>
    %88 = tpu.matmul %87, %69, %cst_25 {dimension_numbers = #tpu.dot_dimension_numbers<[1], [0], [0], [1], [0, 0, 1, 1], [], []>} : vector<3x3xbf16>, vector<3x8xbf16>, vector<3x8xf32> -> vector<3x8xf32>
    "tpu.trace_stop"() : () -> ()
    %89 = vector.extract_strided_slice %13 {offsets = [0, 24], sizes = [3, 8], strides = [1, 1]} : vector<3x96xf32> to vector<3x8xf32>
    %90 = arith.truncf %89 : vector<3x8xf32> to vector<3x8xbf16>
    %91 = vector.extract_strided_slice %13 {offsets = [0, 56], sizes = [3, 8], strides = [1, 1]} : vector<3x96xf32> to vector<3x8xf32>
    %92 = arith.truncf %91 : vector<3x8xf32> to vector<3x8xbf16>
    %93 = vector.extract_strided_slice %13 {offsets = [0, 88], sizes = [3, 8], strides = [1, 1]} : vector<3x96xf32> to vector<3x8xf32>
    %94 = arith.truncf %93 : vector<3x8xf32> to vector<3x8xbf16>
    "tpu.trace_start"() <{level = 10 : i32, message = "qc,kc->qk"}> : () -> ()
    %cst_26 = arith.constant dense<0.000000e+00> : vector<3x3xf32>
    %95 = tpu.matmul %90, %92, %cst_26 {dimension_numbers = #tpu.dot_dimension_numbers<[1], [1], [0], [0], [0, 0, 1, 0], [], []>} : vector<3x8xbf16>, vector<3x8xbf16>, vector<3x3xf32> -> vector<3x3xf32>
    "tpu.trace_stop"() : () -> ()
    %cst_27 = arith.constant 0.353553385 : f32
    %96 = vector.broadcast %cst_27 : f32 to vector<3x3xf32>
    %97 = arith.mulf %95, %96 : vector<3x3xf32>
    %98 = vector.broadcast %8 : vector<1x3xf32> to vector<3x3xf32>
    %99 = arith.addf %97, %98 : vector<3x3xf32>
    %cst_28 = arith.constant dense<0xFF800000> : vector<3xf32>
    %100 = vector.multi_reduction <maximumf>, %99, %cst_28 [1] : vector<3x3xf32> to vector<3xf32>
    %101 = vector.shape_cast %100 : vector<3xf32> to vector<3x1xf32>
    %102 = vector.broadcast %101 : vector<3x1xf32> to vector<3x3xf32>
    %103 = arith.subf %99, %102 : vector<3x3xf32>
    %104 = math.exp %103 : vector<3x3xf32>
    %cst_29 = arith.constant dense<0.000000e+00> : vector<3xf32>
    %105 = vector.multi_reduction <add>, %104, %cst_29 [1] : vector<3x3xf32> to vector<3xf32>
    %106 = vector.shape_cast %105 : vector<3xf32> to vector<3x1xf32>
    %107 = tpu.reciprocal %106 {approx = true} : vector<3x1xf32> -> vector<3x1xf32>
    %108 = vector.broadcast %107 : vector<3x1xf32> to vector<3x3xf32>
    %109 = arith.mulf %104, %108 : vector<3x3xf32>
    %110 = vector.broadcast %4 : vector<1x3xf32> to vector<3x3xf32>
    %111 = arith.mulf %109, %110 : vector<3x3xf32>
    %112 = arith.truncf %111 : vector<3x3xf32> to vector<3x3xbf16>
    "tpu.trace_start"() <{level = 10 : i32, message = "qk,kc->qc"}> : () -> ()
    %cst_30 = arith.constant dense<0.000000e+00> : vector<3x8xf32>
    %113 = tpu.matmul %112, %94, %cst_30 {dimension_numbers = #tpu.dot_dimension_numbers<[1], [0], [0], [1], [0, 0, 1, 1], [], []>} : vector<3x3xbf16>, vector<3x8xbf16>, vector<3x8xf32> -> vector<3x8xf32>
    "tpu.trace_stop"() : () -> ()
    %114 = tpu.concatenate %38, %63, %88, %113 in 1 : vector<3x8xf32>, vector<3x8xf32>, vector<3x8xf32>, vector<3x8xf32> -> vector<3x32xf32>
    %115 = arith.truncf %114 : vector<3x32xf32> to vector<3x32xbf16>
    %c0_31 = arith.constant 0 : index
    %c0_32 = arith.constant 0 : index
    %116 = vector.load %arg5[%c0_31, %c0_32] : memref<32x32xbf16, #tpu.memory_space<vmem>>, vector<32x32xbf16>
    %cst_33 = arith.constant dense<0.000000e+00> : vector<3x32xf32>
    %117 = tpu.matmul %115, %116, %cst_33 {dimension_numbers = #tpu.dot_dimension_numbers<[1], [0], [0], [1], [0, 0, 1, 1], [], []>} : vector<3x32xbf16>, vector<32x32xbf16>, vector<3x32xf32> -> vector<3x32xf32>
    %c0_34 = arith.constant 0 : index
    %c0_35 = arith.constant 0 : index
    %118 = vector.load %arg6[%c0_34, %c0_35] : memref<1x32xf32, #tpu.memory_space<vmem>>, vector<1x32xf32>
    %119 = vector.broadcast %118 : vector<1x32xf32> to vector<3x32xf32>
    %120 = arith.addf %117, %119 : vector<3x32xf32>
    %121 = arith.addf %2, %120 : vector<3x32xf32>
    %cst_36 = arith.constant dense<0.000000e+00> : vector<3xf32>
    %122 = vector.multi_reduction <add>, %121, %cst_36 [1] : vector<3x32xf32> to vector<3xf32>
    %123 = vector.shape_cast %122 : vector<3xf32> to vector<3x1xf32>
    %cst_37 = arith.constant 3.200000e+01 : f32
    %124 = vector.broadcast %cst_37 : f32 to vector<3x1xf32>
    %125 = arith.divf %123, %124 : vector<3x1xf32>
    %126 = vector.broadcast %125 : vector<3x1xf32> to vector<3x32xf32>
    %127 = arith.subf %121, %126 : vector<3x32xf32>
    %128 = arith.mulf %127, %127 : vector<3x32xf32>
    %cst_38 = arith.constant dense<0.000000e+00> : vector<3xf32>
    %129 = vector.multi_reduction <add>, %128, %cst_38 [1] : vector<3x32xf32> to vector<3xf32>
    %130 = vector.shape_cast %129 : vector<3xf32> to vector<3x1xf32>
    %cst_39 = arith.constant 3.200000e+01 : f32
    %131 = vector.broadcast %cst_39 : f32 to vector<3x1xf32>
    %132 = arith.divf %130, %131 : vector<3x1xf32>
    %cst_40 = arith.constant 9.99999974E-6 : f32
    %133 = vector.broadcast %cst_40 : f32 to vector<3x1xf32>
    %134 = arith.addf %132, %133 : vector<3x1xf32>
    %135 = math.rsqrt %134 : vector<3x1xf32>
    %136 = vector.broadcast %135 : vector<3x1xf32> to vector<3x32xf32>
    %137 = arith.mulf %127, %136 : vector<3x32xf32>
    %c0_41 = arith.constant 0 : index
    %c0_42 = arith.constant 0 : index
    %138 = vector.load %arg7[%c0_41, %c0_42] : memref<1x32xf32, #tpu.memory_space<vmem>>, vector<1x32xf32>
    %139 = vector.broadcast %138 : vector<1x32xf32> to vector<3x32xf32>
    %140 = arith.mulf %137, %139 : vector<3x32xf32>
    %c0_43 = arith.constant 0 : index
    %c0_44 = arith.constant 0 : index
    %141 = vector.load %arg8[%c0_43, %c0_44] : memref<1x32xf32, #tpu.memory_space<vmem>>, vector<1x32xf32>
    %142 = vector.broadcast %141 : vector<1x32xf32> to vector<3x32xf32>
    %143 = arith.addf %140, %142 : vector<3x32xf32>
    %144 = arith.truncf %143 : vector<3x32xf32> to vector<3x32xbf16>
    %c0_45 = arith.constant 0 : index
    %c0_46 = arith.constant 0 : index
    %145 = vector.load %arg9[%c0_45, %c0_46] : memref<32x64xbf16, #tpu.memory_space<vmem>>, vector<32x64xbf16>
    %cst_47 = arith.constant dense<0.000000e+00> : vector<3x64xf32>
    %146 = tpu.matmul %144, %145, %cst_47 {dimension_numbers = #tpu.dot_dimension_numbers<[1], [0], [0], [1], [0, 0, 1, 1], [], []>} : vector<3x32xbf16>, vector<32x64xbf16>, vector<3x64xf32> -> vector<3x64xf32>
    %c0_48 = arith.constant 0 : index
    %c0_49 = arith.constant 0 : index
    %147 = vector.load %arg10[%c0_48, %c0_49] : memref<1x64xf32, #tpu.memory_space<vmem>>, vector<1x64xf32>
    %148 = vector.broadcast %147 : vector<1x64xf32> to vector<3x64xf32>
    %149 = arith.addf %146, %148 : vector<3x64xf32>
    %cst_50 = arith.constant 0.000000e+00 : f32
    %150 = vector.broadcast %cst_50 : f32 to vector<3x64xf32>
    %151 = arith.maximumf %149, %150 : vector<3x64xf32>
    %152 = arith.truncf %151 : vector<3x64xf32> to vector<3x64xbf16>
    %c0_51 = arith.constant 0 : index
    %c0_52 = arith.constant 0 : index
    %153 = vector.load %arg11[%c0_51, %c0_52] : memref<64x32xbf16, #tpu.memory_space<vmem>>, vector<64x32xbf16>
    %cst_53 = arith.constant dense<0.000000e+00> : vector<3x32xf32>
    %154 = tpu.matmul %152, %153, %cst_53 {dimension_numbers = #tpu.dot_dimension_numbers<[1], [0], [0], [1], [0, 0, 1, 1], [], []>} : vector<3x64xbf16>, vector<64x32xbf16>, vector<3x32xf32> -> vector<3x32xf32>
    %155 = arith.addf %143, %154 : vector<3x32xf32>
    %c0_54 = arith.constant 0 : index
    %c0_55 = arith.constant 0 : index
    %156 = vector.load %arg12[%c0_54, %c0_55] : memref<1x32xf32, #tpu.memory_space<vmem>>, vector<1x32xf32>
    %157 = vector.broadcast %156 : vector<1x32xf32> to vector<3x32xf32>
    %158 = arith.addf %155, %157 : vector<3x32xf32>
    %cst_56 = arith.constant dense<0.000000e+00> : vector<3xf32>
    %159 = vector.multi_reduction <add>, %158, %cst_56 [1] : vector<3x32xf32> to vector<3xf32>
    %160 = vector.shape_cast %159 : vector<3xf32> to vector<3x1xf32>
    %cst_57 = arith.constant 3.200000e+01 : f32
    %161 = vector.broadcast %cst_57 : f32 to vector<3x1xf32>
    %162 = arith.divf %160, %161 : vector<3x1xf32>
    %163 = vector.broadcast %162 : vector<3x1xf32> to vector<3x32xf32>
    %164 = arith.subf %158, %163 : vector<3x32xf32>
    %165 = arith.mulf %164, %164 : vector<3x32xf32>
    %cst_58 = arith.constant dense<0.000000e+00> : vector<3xf32>
    %166 = vector.multi_reduction <add>, %165, %cst_58 [1] : vector<3x32xf32> to vector<3xf32>
    %167 = vector.shape_cast %166 : vector<3xf32> to vector<3x1xf32>
    %cst_59 = arith.constant 3.200000e+01 : f32
    %168 = vector.broadcast %cst_59 : f32 to vector<3x1xf32>
    %169 = arith.divf %167, %168 : vector<3x1xf32>
    %cst_60 = arith.constant 9.99999974E-6 : f32
    %170 = vector.broadcast %cst_60 : f32 to vector<3x1xf32>
    %171 = arith.addf %169, %170 : vector<3x1xf32>
    %172 = math.rsqrt %171 : vector<3x1xf32>
    %173 = vector.broadcast %172 : vector<3x1xf32> to vector<3x32xf32>
    %174 = arith.mulf %164, %173 : vector<3x32xf32>
    %c0_61 = arith.constant 0 : index
    %c0_62 = arith.constant 0 : index
    %175 = vector.load %arg13[%c0_61, %c0_62] : memref<1x32xf32, #tpu.memory_space<vmem>>, vector<1x32xf32>
    %176 = vector.broadcast %175 : vector<1x32xf32> to vector<3x32xf32>
    %177 = arith.mulf %174, %176 : vector<3x32xf32>
    %c0_63 = arith.constant 0 : index
    %c0_64 = arith.constant 0 : index
    %178 = vector.load %arg14[%c0_63, %c0_64] : memref<1x32xf32, #tpu.memory_space<vmem>>, vector<1x32xf32>
    %179 = vector.broadcast %178 : vector<1x32xf32> to vector<3x32xf32>
    %180 = arith.addf %177, %179 : vector<3x32xf32>
    %181 = arith.truncf %180 : vector<3x32xf32> to vector<3x32xbf16>
    %c0_65 = arith.constant 0 : index
    %c0_66 = arith.constant 0 : index
    %c0_67 = arith.constant 0 : index
    %182 = vector.load %arg15[%c0_65, %c0_66, %c0_67] : memref<1x3x32xbf16, #tpu.memory_space<vmem>>, vector<1x3x32xbf16>
    %183 = vector.shape_cast %182 : vector<1x3x32xbf16> to vector<3x32xbf16>
    %184 = vector.shape_cast %181 : vector<3x32xbf16> to vector<1x3x32xbf16>
    tpu.vector_store %arg15[%c0_65, %c0_66, %c0_67], %184 {strides = array<i32>} : memref<1x3x32xbf16, #tpu.memory_space<vmem>>, vector<1x3x32xbf16>,
    return
  }
  func.func @transform_0(%arg0: i32) -> (i32, i32, i32) {
    %c0_i32 = arith.constant 0 : i32
    %c0_i32_0 = arith.constant 0 : i32
    %c0_i32_1 = arith.constant 0 : i32
    return %arg0, %c0_i32, %c0_i32_0 : i32, i32, i32
  }
  func.func @transform_1(%arg0: i32) -> (i32, i32, i32) {
    %c0_i32 = arith.constant 0 : i32
    %c0_i32_0 = arith.constant 0 : i32
    %c0_i32_1 = arith.constant 0 : i32
    return %arg0, %c0_i32, %c0_i32_0 : i32, i32, i32
  }
  func.func @transform_2(%arg0: i32) -> (i32, i32) {
    %c0_i32 = arith.constant 0 : i32
    %c0_i32_0 = arith.constant 0 : i32
    %c0_i32_1 = arith.constant 0 : i32
    return %c0_i32, %c0_i32_0 : i32, i32
  }
  func.func @transform_3(%arg0: i32) -> (i32, i32) {
    %c0_i32 = arith.constant 0 : i32
    %c0_i32_0 = arith.constant 0 : i32
    %c0_i32_1 = arith.constant 0 : i32
    return %c0_i32, %c0_i32_0 : i32, i32
  }
  func.func @transform_4(%arg0: i32) -> (i32, i32) {
    %c0_i32 = arith.constant 0 : i32
    %c0_i32_0 = arith.constant 0 : i32
    %c0_i32_1 = arith.constant 0 : i32
    return %c0_i32, %c0_i32_0 : i32, i32
  }
  func.func @transform_5(%arg0: i32) -> (i32, i32) {
    %c0_i32 = arith.constant 0 : i32
    %c0_i32_0 = arith.constant 0 : i32
    %c0_i32_1 = arith.constant 0 : i32
    return %c0_i32, %c0_i32_0 : i32, i32
  }
  func.func @transform_6(%arg0: i32) -> (i32, i32) {
    %c0_i32 = arith.constant 0 : i32
    %c0_i32_0 = arith.constant 0 : i32
    %c0_i32_1 = arith.constant 0 : i32
    return %c0_i32, %c0_i32_0 : i32, i32
  }
  func.func @transform_7(%arg0: i32) -> (i32, i32) {
    %c0_i32 = arith.constant 0 : i32
    %c0_i32_0 = arith.constant 0 : i32
    %c0_i32_1 = arith.constant 0 : i32
    return %c0_i32, %c0_i32_0 : i32, i32
  }
  func.func @transform_8(%arg0: i32) -> (i32, i32) {
    %c0_i32 = arith.constant 0 : i32
    %c0_i32_0 = arith.constant 0 : i32
    %c0_i32_1 = arith.constant 0 : i32
    return %c0_i32, %c0_i32_0 : i32, i32
  }
  func.func @transform_9(%arg0: i32) -> (i32, i32) {
    %c0_i32 = arith.constant 0 : i32
    %c0_i32_0 = arith.constant 0 : i32
    %c0_i32_1 = arith.constant 0 : i32
    return %c0_i32, %c0_i32_0 : i32, i32
  }
  func.func @transform_10(%arg0: i32) -> (i32, i32) {
    %c0_i32 = arith.constant 0 : i32
    %c0_i32_0 = arith.constant 0 : i32
    %c0_i32_1 = arith.constant 0 : i32
    return %c0_i32, %c0_i32_0 : i32, i32
  }
  func.func @transform_11(%arg0: i32) -> (i32, i32) {
    %c0_i32 = arith.constant 0 : i32
    %c0_i32_0 = arith.constant 0 : i32
    %c0_i32_1 = arith.constant 0 : i32
    return %c0_i32, %c0_i32_0 : i32, i32
  }
  func.func @transform_12(%arg0: i32) -> (i32, i32) {
    %c0_i32 = arith.constant 0 : i32
    %c0_i32_0 = arith.constant 0 : i32
    %c0_i32_1 = arith.constant 0 : i32
    return %c0_i32, %c0_i32_0 : i32, i32
  }
  func.func @transform_13(%arg0: i32) -> (i32, i32) {
    %c0_i32 = arith.constant 0 : i32
    %c0_i32_0 = arith.constant 0 : i32
    %c0_i32_1 = arith.constant 0 : i32
    return %c0_i32, %c0_i32_0 : i32, i32
  }
  func.func @transform_14(%arg0: i32) -> (i32, i32, i32) {
    %c0_i32 = arith.constant 0 : i32
    %c0_i32_0 = arith.constant 0 : i32
    %c0_i32_1 = arith.constant 0 : i32
    return %arg0, %c0_i32, %c0_i32_0 : i32, i32, i32
  }
}

module attributes {stable_mosaic.version = 11 : i64} {
  func.func @_embed_kernel(%arg0: i32, %arg1: memref<1x3x96xbf16, #tpu.memory_space<vmem>>, %arg2: memref<96x32xbf16, #tpu.memory_space<vmem>>, %arg3: memref<1x32xf32, #tpu.memory_space<vmem>>, %arg4: memref<1x3x32xf32, #tpu.memory_space<vmem>>, %arg5: memref<1x3x1xf32, #tpu.memory_space<vmem>>, %arg6: memref<1x3x32xbf16, #tpu.memory_space<vmem>>) attributes {dimension_semantics = [#tpu.dimension_semantics<parallel>], iteration_bounds = array<i64: 2>, scalar_prefetch = 0 : i64, scratch_operands = 0 : i64, tpu.core_type = #tpu.core_type<tc>, window_params = [{transform_indices = @transform_0, window_bounds = array<i64: 1, 3, 96>}, {pipeline_mode = #tpu.pipeline_mode<synchronous>, transform_indices = @transform_1, window_bounds = array<i64: 96, 32>}, {pipeline_mode = #tpu.pipeline_mode<synchronous>, transform_indices = @transform_2, window_bounds = array<i64: 1, 32>}, {pipeline_mode = #tpu.pipeline_mode<synchronous>, transform_indices = @transform_3, window_bounds = array<i64: 1, 3, 32>}, {transform_indices = @transform_4, window_bounds = array<i64: 1, 3, 1>}, {transform_indices = @transform_5, window_bounds = array<i64: 1, 3, 32>}]} {
    %c0 = arith.constant 0 : index
    %c0_0 = arith.constant 0 : index
    %c0_1 = arith.constant 0 : index
    %0 = vector.load %arg1[%c0, %c0_0, %c0_1] : memref<1x3x96xbf16, #tpu.memory_space<vmem>>, vector<1x3x96xbf16>
    %1 = vector.shape_cast %0 : vector<1x3x96xbf16> to vector<3x96xbf16>
    %c0_2 = arith.constant 0 : index
    %c0_3 = arith.constant 0 : index
    %2 = vector.load %arg2[%c0_2, %c0_3] : memref<96x32xbf16, #tpu.memory_space<vmem>>, vector<96x32xbf16>
    %cst = arith.constant dense<0.000000e+00> : vector<3x32xf32>
    %3 = tpu.matmul %1, %2, %cst {dimension_numbers = #tpu.dot_dimension_numbers<[1], [0], [0], [1], [0, 0, 1, 1], [], []>} : vector<3x96xbf16>, vector<96x32xbf16>, vector<3x32xf32> -> vector<3x32xf32>
    %c0_4 = arith.constant 0 : index
    %c0_5 = arith.constant 0 : index
    %4 = vector.load %arg3[%c0_4, %c0_5] : memref<1x32xf32, #tpu.memory_space<vmem>>, vector<1x32xf32>
    %5 = vector.broadcast %4 : vector<1x32xf32> to vector<3x32xf32>
    %6 = arith.addf %3, %5 : vector<3x32xf32>
    %cst_6 = arith.constant 5.65685415 : f32
    %7 = vector.broadcast %cst_6 : f32 to vector<3x32xf32>
    %8 = arith.mulf %6, %7 : vector<3x32xf32>
    %c0_7 = arith.constant 0 : index
    %c0_8 = arith.constant 0 : index
    %c0_9 = arith.constant 0 : index
    %9 = vector.load %arg4[%c0_7, %c0_8, %c0_9] : memref<1x3x32xf32, #tpu.memory_space<vmem>>, vector<1x3x32xf32>
    %10 = vector.shape_cast %9 : vector<1x3x32xf32> to vector<3x32xf32>
    %11 = arith.addf %8, %10 : vector<3x32xf32>
    %c0_10 = arith.constant 0 : index
    %c0_11 = arith.constant 0 : index
    %c0_12 = arith.constant 0 : index
    %12 = vector.load %arg5[%c0_10, %c0_11, %c0_12] : memref<1x3x1xf32, #tpu.memory_space<vmem>>, vector<1x3x1xf32>
    %13 = vector.shape_cast %12 : vector<1x3x1xf32> to vector<3x1xf32>
    %14 = vector.broadcast %13 : vector<3x1xf32> to vector<3x32xf32>
    %15 = arith.mulf %11, %14 : vector<3x32xf32>
    %16 = arith.truncf %15 : vector<3x32xf32> to vector<3x32xbf16>
    %c0_13 = arith.constant 0 : index
    %c0_14 = arith.constant 0 : index
    %c0_15 = arith.constant 0 : index
    %17 = vector.load %arg6[%c0_13, %c0_14, %c0_15] : memref<1x3x32xbf16, #tpu.memory_space<vmem>>, vector<1x3x32xbf16>
    %18 = vector.shape_cast %17 : vector<1x3x32xbf16> to vector<3x32xbf16>
    %19 = vector.shape_cast %16 : vector<3x32xbf16> to vector<1x3x32xbf16>
    tpu.vector_store %arg6[%c0_13, %c0_14, %c0_15], %19 {strides = array<i32>} : memref<1x3x32xbf16, #tpu.memory_space<vmem>>, vector<1x3x32xbf16>,
    return
  }
  func.func @transform_0(%arg0: i32) -> (i32, i32, i32) {
    %c0_i32 = arith.constant 0 : i32
    %c0_i32_0 = arith.constant 0 : i32
    %c0_i32_1 = arith.constant 0 : i32
    return %arg0, %c0_i32, %c0_i32_0 : i32, i32, i32
  }
  func.func @transform_1(%arg0: i32) -> (i32, i32) {
    %c0_i32 = arith.constant 0 : i32
    %c0_i32_0 = arith.constant 0 : i32
    %c0_i32_1 = arith.constant 0 : i32
    return %c0_i32, %c0_i32_0 : i32, i32
  }
  func.func @transform_2(%arg0: i32) -> (i32, i32) {
    %c0_i32 = arith.constant 0 : i32
    %c0_i32_0 = arith.constant 0 : i32
    %c0_i32_1 = arith.constant 0 : i32
    return %c0_i32, %c0_i32_0 : i32, i32
  }
  func.func @transform_3(%arg0: i32) -> (i32, i32, i32) {
    %c0_i32 = arith.constant 0 : i32
    %c0_i32_0 = arith.constant 0 : i32
    %c0_i32_1 = arith.constant 0 : i32
    %c0_i32_2 = arith.constant 0 : i32
    return %c0_i32, %c0_i32_0, %c0_i32_1 : i32, i32, i32
  }
  func.func @transform_4(%arg0: i32) -> (i32, i32, i32) {
    %c0_i32 = arith.constant 0 : i32
    %c0_i32_0 = arith.constant 0 : i32
    %c0_i32_1 = arith.constant 0 : i32
    return %arg0, %c0_i32, %c0_i32_0 : i32, i32, i32
  }
  func.func @transform_5(%arg0: i32) -> (i32, i32, i32) {
    %c0_i32 = arith.constant 0 : i32
    %c0_i32_0 = arith.constant 0 : i32
    %c0_i32_1 = arith.constant 0 : i32
    return %arg0, %c0_i32, %c0_i32_0 : i32, i32, i32
  }
}

module attributes {stable_mosaic.version = 11 : i64} {
  func.func @_classifier_kernel(%arg0: i32, %arg1: memref<16x32xbf16, #tpu.memory_space<vmem>>, %arg2: memref<32x64xbf16, #tpu.memory_space<vmem>>, %arg3: memref<1x64xf32, #tpu.memory_space<vmem>>, %arg4: memref<16x64xf32, #tpu.memory_space<vmem>>) attributes {dimension_semantics = [#tpu.dimension_semantics<parallel>], iteration_bounds = array<i64: 1>, scalar_prefetch = 0 : i64, scratch_operands = 0 : i64, tpu.core_type = #tpu.core_type<tc>, window_params = [{transform_indices = @transform_0, window_bounds = array<i64: 16, 32>}, {pipeline_mode = #tpu.pipeline_mode<synchronous>, transform_indices = @transform_1, window_bounds = array<i64: 32, 64>}, {pipeline_mode = #tpu.pipeline_mode<synchronous>, transform_indices = @transform_2, window_bounds = array<i64: 1, 64>}, {transform_indices = @transform_3, window_bounds = array<i64: 16, 64>}]} {
    %c0 = arith.constant 0 : index
    %c0_0 = arith.constant 0 : index
    %0 = vector.load %arg1[%c0, %c0_0] : memref<16x32xbf16, #tpu.memory_space<vmem>>, vector<16x32xbf16>
    %c0_1 = arith.constant 0 : index
    %c0_2 = arith.constant 0 : index
    %1 = vector.load %arg2[%c0_1, %c0_2] : memref<32x64xbf16, #tpu.memory_space<vmem>>, vector<32x64xbf16>
    %cst = arith.constant dense<0.000000e+00> : vector<16x64xf32>
    %2 = tpu.matmul %0, %1, %cst {dimension_numbers = #tpu.dot_dimension_numbers<[1], [0], [0], [1], [0, 0, 1, 1], [], []>} : vector<16x32xbf16>, vector<32x64xbf16>, vector<16x64xf32> -> vector<16x64xf32>
    %c0_3 = arith.constant 0 : index
    %c0_4 = arith.constant 0 : index
    %3 = vector.load %arg3[%c0_3, %c0_4] : memref<1x64xf32, #tpu.memory_space<vmem>>, vector<1x64xf32>
    %4 = vector.broadcast %3 : vector<1x64xf32> to vector<16x64xf32>
    %5 = arith.addf %2, %4 : vector<16x64xf32>
    %cst_5 = arith.constant dense<0xFF800000> : vector<16xf32>
    %6 = vector.multi_reduction <maximumf>, %5, %cst_5 [1] : vector<16x64xf32> to vector<16xf32>
    %7 = vector.shape_cast %6 : vector<16xf32> to vector<16x1xf32>
    %8 = vector.broadcast %7 : vector<16x1xf32> to vector<16x64xf32>
    %9 = arith.subf %5, %8 : vector<16x64xf32>
    %10 = math.exp %9 : vector<16x64xf32>
    %cst_6 = arith.constant dense<0.000000e+00> : vector<16xf32>
    %11 = vector.multi_reduction <add>, %10, %cst_6 [1] : vector<16x64xf32> to vector<16xf32>
    %12 = vector.shape_cast %11 : vector<16xf32> to vector<16x1xf32>
    %13 = math.log %12 : vector<16x1xf32>
    %14 = vector.broadcast %13 : vector<16x1xf32> to vector<16x64xf32>
    %15 = arith.subf %9, %14 : vector<16x64xf32>
    %c0_7 = arith.constant 0 : index
    %c0_8 = arith.constant 0 : index
    %16 = vector.load %arg4[%c0_7, %c0_8] : memref<16x64xf32, #tpu.memory_space<vmem>>, vector<16x64xf32>
    tpu.vector_store %arg4[%c0_7, %c0_8], %15 {strides = array<i32>} : memref<16x64xf32, #tpu.memory_space<vmem>>, vector<16x64xf32>,
    return
  }
  func.func @transform_0(%arg0: i32) -> (i32, i32) {
    %c0_i32 = arith.constant 0 : i32
    %c0_i32_0 = arith.constant 0 : i32
    return %arg0, %c0_i32 : i32, i32
  }
  func.func @transform_1(%arg0: i32) -> (i32, i32) {
    %c0_i32 = arith.constant 0 : i32
    %c0_i32_0 = arith.constant 0 : i32
    %c0_i32_1 = arith.constant 0 : i32
    return %c0_i32, %c0_i32_0 : i32, i32
  }
  func.func @transform_2(%arg0: i32) -> (i32, i32) {
    %c0_i32 = arith.constant 0 : i32
    %c0_i32_0 = arith.constant 0 : i32
    %c0_i32_1 = arith.constant 0 : i32
    return %c0_i32, %c0_i32_0 : i32, i32
  }
  func.func @transform_3(%arg0: i32) -> (i32, i32) {
    %c0_i32 = arith.constant 0 : i32
    %c0_i32_0 = arith.constant 0 : i32
    return %arg0, %c0_i32 : i32, i32
  }
}

</mosaic_0001>

<llo_original>
// kernel: _lambda_.6
$region0: #{_lambda_.6}
  #allocation0 [shape = 'u32[]', space=smem, size = 0x4, offset = 0x4, fixed_abs, tag = 'smem constant byte address 0x4 - core index']
  #allocation1 [shape = 'u32[72,128]{1,0:T(1,128)}', space=vmem, size = 0x9000, scoped, tag = 'internal scratch']
  %s0 = inlined_call_operand.vmem [shape: bf16[128,9], index: 0, kind: input, shape index: {}]
  %s1 = inlined_call_operand.vmem [shape: bf16[9,32], index: 1, kind: input, shape index: {}]
  %s2 = inlined_call_operand.vmem [shape: f32[1,32], index: 2, kind: input, shape index: {}]
  %s3 = inlined_call_operand.vmem [shape: bf16[128,32], index: 3, kind: output, shape index: {}]
  %s4 = sld [smem:[#allocation0]]
  $region45: #{_lambda_.6} parent=0
    _
  %s6 = ssub.s32 1, %s4
  %s7 = scalar_select 0, %s6, %s4
  loop: start=0, step=1, limit=4
  $region2: #{_lambda_.6} parent=0 // loop_pre_header
    _
  $region3: #{_lambda_.6} parent=0 // loop_header
    %s9 = sphi 0, %s13
    %p10 = scmp.ge.s32.totalorder %s9, 4
    %s19 = sphi 0, %s21
    %s22 = sphi 0, %s19
    %s23 = sphi 0, %s22
    %s39 = sphi 0, %s23
    %s43 = sphi 0, %s43
    %s45 = sphi 0, %s43
    %s46 = sphi 0, %s45
    %s60 = sphi 0, %s46
    %s64 = sphi 0, %s64
    %s66 = sphi 0, %s64
    %s67 = sphi 0, %s66
    %s81 = sphi 0, %s67
    %s87 = sphi 0, %s89
    %s90 = sphi 0, %s87
    %s91 = sphi 0, %s90
    %s107 = sphi 0, %s91
  $region4: #{_lambda_.6} parent=0 // loop_header_branch
    %12 = sbr.rel (%p10) target = $region8
  $region5: #{_lambda_.6} parent=0 // loop_body
    %s14 = ssub.s32 %s9, 1
    %s15 = ssub.s32 %s9, 2
    %s16 = sadd.s32 %s9, 1
    %s17 = ssub.s32 %s9, %s16
    %p18 = scmp.eq.s32.totalorder %s17, 0
    %s20 = sadd.s32 %s19, 1
    %s21 = scalar_select %p18, %s19, %s20
    %p24 = pneg %p18
    %p25 = scmp.eq.s32.totalorder %s9, 1
    %p26 = por %p24, %p25
    %p27 = scmp.ne.s32.totalorder %s19, %s22
    %p28 = scmp.eq.s32.totalorder %s9, 0
    %p29 = por %p27, %p28
    %p30 = scmp.ne.s32.totalorder %s19, %s22
    %p31 = scmp.eq.s32.totalorder %s14, 1
    %p32 = por %p30, %p31
    %p33 = scmp.ne.s32.totalorder %s22, %s23
    %p34 = scmp.eq.s32.totalorder %s14, 0
    %p35 = por %p33, %p34
    %p36 = scmp.ne.s32.totalorder %s22, %s23
    %p37 = scmp.eq.s32.totalorder %s15, 1
    %p38 = por %p36, %p37
    %p40 = scmp.ne.s32.totalorder %s23, %s39
    %p41 = scmp.eq.s32.totalorder %s15, 0
    %p42 = por %p40, %p41
    %s44 = sadd.s32 %s43, 1
    %p47 = scmp.eq.s32.totalorder %s9, 1
    %p48 = scmp.ne.s32.totalorder %s43, %s45
    %p49 = scmp.eq.s32.totalorder %s9, 0
    %p50 = por %p48, %p49
    %p51 = scmp.ne.s32.totalorder %s43, %s45
    %p52 = scmp.eq.s32.totalorder %s14, 1
    %p53 = por %p51, %p52
    %p54 = scmp.ne.s32.totalorder %s45, %s46
    %p55 = scmp.eq.s32.totalorder %s14, 0
    %p56 = por %p54, %p55
    %p57 = scmp.ne.s32.totalorder %s45, %s46
    %p58 = scmp.eq.s32.totalorder %s15, 1
    %p59 = por %p57, %p58
    %p61 = scmp.ne.s32.totalorder %s46, %s60
    %p62 = scmp.eq.s32.totalorder %s15, 0
    %p63 = por %p61, %p62
    %s65 = sadd.s32 %s64, 1
    %p68 = scmp.eq.s32.totalorder %s9, 1
    %p69 = scmp.ne.s32.totalorder %s64, %s66
    %p70 = scmp.eq.s32.totalorder %s9, 0
    %p71 = por %p69, %p70
    %p72 = scmp.ne.s32.totalorder %s64, %s66
    %p73 = scmp.eq.s32.totalorder %s14, 1
    %p74 = por %p72, %p73
    %p75 = scmp.ne.s32.totalorder %s66, %s67
    %p76 = scmp.eq.s32.totalorder %s14, 0
    %p77 = por %p75, %p76
    %p78 = scmp.ne.s32.totalorder %s66, %s67
    %p79 = scmp.eq.s32.totalorder %s15, 1
    %p80 = por %p78, %p79
    %p82 = scmp.ne.s32.totalorder %s67, %s81
    %p83 = scmp.eq.s32.totalorder %s15, 0
    %p84 = por %p82, %p83
    %s85 = ssub.s32 %s9, %s16
    %p86 = scmp.eq.s32.totalorder %s85, 0
    %s88 = sadd.s32 %s87, 1
    %s89 = scalar_select %p86, %s87, %s88
    %p92 = pneg %p86
    %p93 = scmp.eq.s32.totalorder %s9, 1
    %p94 = por %p92, %p93
    %p95 = scmp.ne.s32.totalorder %s87, %s90
    %p96 = scmp.eq.s32.totalorder %s9, 0
    %p97 = por %p95, %p96
    %p98 = scmp.ne.s32.totalorder %s87, %s90
    %p99 = scmp.eq.s32.totalorder %s14, 1
    %p100 = por %p98, %p99
    %p101 = scmp.ne.s32.totalorder %s90, %s91
    %p102 = scmp.eq.s32.totalorder %s14, 0
    %p103 = por %p101, %p102
    %p104 = scmp.ne.s32.totalorder %s90, %s91
    %p105 = scmp.eq.s32.totalorder %s15, 1
    %p106 = por %p104, %p105
    %p108 = scmp.ne.s32.totalorder %s91, %s107
    %p109 = scmp.eq.s32.totalorder %s15, 0
    %p110 = por %p108, %p109
    %p111 = scmp.le.s32.totalorder 1, %s9
    %p112 = scmp.lt.s32.totalorder %s9, 3
    %p113 = pnand %p111, %p112
    %p114 = pneg %p113
    // Predicated region
    $region9: #{_lambda_.6} parent=5 // pred_check
      _
    $region10: #{_lambda_.6} parent=5 // pred_check_branch
      %116 = sbr.rel (%p113) target = $region12
    $region11: #{_lambda_.6} parent=5 // pred_region
      %s117 = ssub.s32 %s9, 1
      // Predicated region
      $region13: #{_lambda_.6} parent=11 // pred_check
        %p118 = pneg %p56
      $region14: #{_lambda_.6} parent=11 // pred_check_branch
        %120 = sbr.rel (%p118) target = $region16
      $region15: #{_lambda_.6} parent=11 // pred_region
        _
      $region16: #{_lambda_.6} parent=11 // pred_fallthru
        _
      // Predicated region
      $region17: #{_lambda_.6} parent=11 // pred_check
        %p121 = pneg %p77
      $region18: #{_lambda_.6} parent=11 // pred_check_branch
        %123 = sbr.rel (%p121) target = $region20
      $region19: #{_lambda_.6} parent=11 // pred_region
        _
      $region20: #{_lambda_.6} parent=11 // pred_fallthru
        _
    $region12: #{_lambda_.6} parent=5 // pred_fallthru
      _
    %p124 = scmp.lt.s32.totalorder %s9, 2
    // Predicated region
    $region21: #{_lambda_.6} parent=5 // pred_check
      %p125 = pneg %p124
    $region22: #{_lambda_.6} parent=5 // pred_check_branch
      %127 = sbr.rel (%p125) target = $region24
    $region23: #{_lambda_.6} parent=5 // pred_region
      // Predicated region
      $region25: #{_lambda_.6} parent=23 // pred_check
        %p128 = pneg %p29
      $region26: #{_lambda_.6} parent=23 // pred_check_branch
        %130 = sbr.rel (%p128) target = $region28
      $region27: #{_lambda_.6} parent=23 // pred_region
        %s131 = smul.u32 8, %s9
        %p132 = scmp.lt.s32.totalorder %s131, 15
        %s133 = scalar_select %p132, %s131, 15
        %s134 = smul.addr %s133, 4
        %s135 = scalar_lea.vmem %s0, %s134
        %s136 = smul.u32 8, %s9
      $region28: #{_lambda_.6} parent=23 // pred_fallthru
        _
    $region24: #{_lambda_.6} parent=5 // pred_fallthru
      _
    %p137 = scmp.le.s32.totalorder 1, %s9
    %p138 = scmp.lt.s32.totalorder %s9, 3
    %p139 = pnand %p137, %p138
    %p140 = pneg %p139
    // Predicated region
    $region29: #{_lambda_.6} parent=5 // pred_check
      _
    $region30: #{_lambda_.6} parent=5 // pred_check_branch
      %142 = sbr.rel (%p139) target = $region32
    $region31: #{_lambda_.6} parent=5 // pred_region
      %s143 = ssub.s32 %s9, 1
      %s144 = smul.u32 8, %s14
      %p145 = scmp.lt.s32.totalorder %s144, 15
      %s146 = scalar_select %p145, %s144, 15
      %s147 = smul.addr %s146, 4
      %s148 = scalar_lea.vmem %s0, %s147
      %p149 = pneg %p35
      %p150 = pneg %p32
      %p151 = pneg %p56
      %p152 = pneg %p53
      %p153 = pneg %p77
      %p154 = pneg %p74
      %p155 = pneg %p103
      %p156 = pneg %p100
      %s157 = smul.u32 8, %s14
      %p158 = scmp.lt.s32.totalorder %s157, 15
      %s159 = scalar_select %p158, %s157, 15
      %s160 = smul.addr %s159, 4
      %s161 = scalar_lea.vmem %s3, %s160
      %s162 = smul.u32 8, %s14
      %p163 = scmp.lt.s32.totalorder %s162, 15
      %s164 = scalar_select %p163, %s162, 15
      %s165 = smul.addr %s164, 4
      %s166 = scalar_lea.vmem %s0, %s165
      %s167 = smul.u32 8, %s14
      %s168 = smul.u32 8, %s14
      %p169 = scmp.lt.s32.totalorder %s168, 15
      %s170 = scalar_select %p169, %s168, 15
      %s171 = smul.addr %s170, 4
      %s172 = scalar_lea.vmem %s3, %s171
      %s173 = smul.u32 8, %s14
      %v175 = vld [vmem:[%s166] sm:$0xf]
      %v176 = vld [vmem:[%s166 + $0x4] sm:$0xf]
      %v177 = vld [vmem:[%s166 + $0x8] sm:$0xf]
      %v178 = vld [vmem:[%s166 + $0xc] sm:$0xf]
      %v179 = vld [vmem:[%s166 + $0x10] sm:$0xf]
      %v180 = vld [vmem:[%s166 + $0x14] sm:$0xf]
      %v181 = vld [vmem:[%s166 + $0x18] sm:$0xf]
      %v182 = vld [vmem:[%s166 + $0x1c] sm:$0xf]
      %v183 = vld [vmem:[%s1] sm:$0xf]
      %v184 = vld [vmem:[%s1 + $0x4] sm:$0x1]
      %v185 = vld [vmem:[%s2] sm:$0x1]
      %v187 = vperm.slane %v185, 0
      %v197 = vunpack.c.l.b16 %v175
      %v198 = vunpack.c.l.b16 %v176
      %v199 = vunpack.c.l.b16 %v177
      %v200 = vunpack.c.l.b16 %v178
      %v201 = vunpack.c.l.b16 %v179
      %v202 = vunpack.c.l.b16 %v180
      %v203 = vunpack.c.l.b16 %v181
      %v204 = vunpack.c.l.b16 %v182
      %v205 = vpack.c.b16 %v198, %v197
      %v206 = vpack.c.b16 %v200, %v199
      %v207 = vpack.c.b16 %v202, %v201
      %v208 = vpack.c.b16 %v204, %v203
      %v211 = vunpack.c.l.b16 %v183
      %v212 = vunpack.c.l.b16 %v184
      %v213 = vpack.c.b16 %v212, %v211
      %vm214 = vcmask 72704
      %v216 = vsel %vm214, %v205, 0
      %v219 = vsel %vm214, %v206, 0
      %v222 = vsel %vm214, %v207, 0
      %v225 = vsel %vm214, %v208, 0
      %vm227 = vcmask 1043456
      %vm228 = vcmask 1044480
      %v229 = vsel %vm227, 4294967295, 65535
      %v230 = vsel %vm228, %v229, 0
      %v232 = vand.u32 %v213, %v230
      %234 = vmatpush.bf16.msra.mxu0 0
      %235 = vmatpush.bf16.msra.mxu0 0
      %236 = vmatpush.bf16.msra.mxu0 0
      %237 = vmatpush.bf16.msra.mxu0 0
      %238 = vmatpush.bf16.msra.mxu0 0
      %239 = vmatpush.bf16.msra.mxu0 0
      %240 = vmatpush.bf16.msra.mxu0 0
      %241 = vmatpush.bf16.msra.mxu0 %v232
      %242 = vmatmul.bf16.gmra.mxu0 %v216
      %v243 = vpop.f32.mrf.mxu0
      %v244 = vadd.f32 %v187, %v243
      %v245 = vpop.f32.mrf.mxu0
      %v246 = vadd.f32 %v187, %v245
      %247 = vmatmul.bf16.gmra.mxu0 %v219
      %v248 = vpop.f32.mrf.mxu0
      %v249 = vadd.f32 %v187, %v248
      %v250 = vpop.f32.mrf.mxu0
      %v251 = vadd.f32 %v187, %v250
      %252 = vmatmul.bf16.gmra.mxu0 %v222
      %v253 = vpop.f32.mrf.mxu0
      %v254 = vadd.f32 %v187, %v253
      %v255 = vpop.f32.mrf.mxu0
      %v256 = vadd.f32 %v187, %v255
      %257 = vmatmul.bf16.gmra.mxu0 %v225
      %v258 = vpop.f32.mrf.mxu0
      %v259 = vadd.f32 %v187, %v258
      %v260 = vpop.f32.mrf.mxu0
      %v261 = vadd.f32 %v187, %v260
      %262 = vdwg.mxu0
      %v263 = vmax.f32 %v244, 0.0
      %v264 = vmax.f32 %v246, 0.0
      %v265 = vmax.f32 %v249, 0.0
      %v266 = vmax.f32 %v251, 0.0
      %v267 = vmax.f32 %v254, 0.0
      %v268 = vmax.f32 %v256, 0.0
      %v269 = vmax.f32 %v259, 0.0
      %v270 = vmax.f32 %v261, 0.0
      %v271 = vpack.c.bf16 %v263, %v263
      %v272 = vpack.c.bf16 %v264, %v264
      %v273 = vpack.c.bf16 %v265, %v265
      %v274 = vpack.c.bf16 %v266, %v266
      %v275 = vpack.c.bf16 %v267, %v267
      %v276 = vpack.c.bf16 %v268, %v268
      %v277 = vpack.c.bf16 %v269, %v269
      %v278 = vpack.c.bf16 %v270, %v270
      %vm279 = vcmask 257024
      %280 = vst.msk [vmem:[%s172] sm:$0xf] %vm279, %v271
      %281 = vst.msk [vmem:[%s172 + $0x4] sm:$0xf] %vm279, %v272
      %282 = vst.msk [vmem:[%s172 + $0x8] sm:$0xf] %vm279, %v273
      %283 = vst.msk [vmem:[%s172 + $0xc] sm:$0xf] %vm279, %v274
      %284 = vst.msk [vmem:[%s172 + $0x10] sm:$0xf] %vm279, %v275
      %285 = vst.msk [vmem:[%s172 + $0x14] sm:$0xf] %vm279, %v276
      %286 = vst.msk [vmem:[%s172 + $0x18] sm:$0xf] %vm279, %v277
      %287 = vst.msk [vmem:[%s172 + $0x1c] sm:$0xf] %vm279, %v278
      %s288 = smul.u32 8, %s14
      %p289 = scmp.lt.s32.totalorder %s288, 15
      %s290 = scalar_select %p289, %s288, 15
      %s291 = smul.addr %s290, 4
      %s292 = scalar_lea.vmem %s3, %s291
      // Predicated region
      $region33: #{_lambda_.6} parent=31 // pred_check
        %p293 = pneg %p100
      $region34: #{_lambda_.6} parent=31 // pred_check_branch
        %295 = sbr.rel (%p293) target = $region36
      $region35: #{_lambda_.6} parent=31 // pred_region
        %s296 = smul.u32 8, %s14
      $region36: #{_lambda_.6} parent=31 // pred_fallthru
        _
    $region32: #{_lambda_.6} parent=5 // pred_fallthru
      _
    %p297 = scmp.le.s32.totalorder 2, %s9
    // Predicated region
    $region37: #{_lambda_.6} parent=5 // pred_check
      %p298 = pneg %p297
    $region38: #{_lambda_.6} parent=5 // pred_check_branch
      %300 = sbr.rel (%p298) target = $region40
    $region39: #{_lambda_.6} parent=5 // pred_region
      %s301 = ssub.s32 %s9, 2
      // Predicated region
      $region41: #{_lambda_.6} parent=39 // pred_check
        %p302 = pneg %p106
      $region42: #{_lambda_.6} parent=39 // pred_check_branch
        %304 = sbr.rel (%p302) target = $region44
      $region43: #{_lambda_.6} parent=39 // pred_region
        %s305 = smul.u32 8, %s15
        %p306 = scmp.lt.s32.totalorder %s305, 15
        %s307 = scalar_select %p306, %s305, 15
        %s308 = smul.addr %s307, 4
        %s309 = scalar_lea.vmem %s3, %s308
      $region44: #{_lambda_.6} parent=39 // pred_fallthru
        _
    $region40: #{_lambda_.6} parent=5 // pred_fallthru
      _
  $region6: #{_lambda_.6} parent=0 // loop_footer
    %s13 = sadd.s32 1, %s9
  $region7: #{_lambda_.6} parent=0 // loop_footer_branch
    %8 = sbr.rel target = $region3
  $region8: #{_lambda_.6} parent=0 // loop_exit
    _

// kernel: _lambda_.7
$region0: #{_lambda_.7}
  #allocation0 [shape = 'u32[]', space=smem, size = 0x4, offset = 0x4, fixed_abs, tag = 'smem constant byte address 0x4 - core index']
  #allocation1 [shape = 'u32[72,128]{1,0:T(1,128)}', space=vmem, size = 0x9000, scoped, tag = 'internal scratch']
  %s0 = inlined_call_operand.vmem [shape: bf16[32,288], index: 0, kind: input, shape index: {}]
  %s1 = inlined_call_operand.vmem [shape: bf16[288,32], index: 1, kind: input, shape index: {}]
  %s2 = inlined_call_operand.vmem [shape: f32[1,32], index: 2, kind: input, shape index: {}]
  %s3 = inlined_call_operand.vmem [shape: bf16[32,32], index: 3, kind: output, shape index: {}]
  %s4 = sld [smem:[#allocation0]]
  $region45: #{_lambda_.7} parent=0
    _
  %s6 = ssub.s32 1, %s4
  %s7 = scalar_select 0, %s6, %s4
  loop: start=0, step=1, limit=4
  $region2: #{_lambda_.7} parent=0 // loop_pre_header
    _
  $region3: #{_lambda_.7} parent=0 // loop_header
    %s9 = sphi 0, %s13
    %p10 = scmp.ge.s32.totalorder %s9, 4
    %s19 = sphi 0, %s21
    %s22 = sphi 0, %s19
    %s23 = sphi 0, %s22
    %s39 = sphi 0, %s23
    %s43 = sphi 0, %s43
    %s45 = sphi 0, %s43
    %s46 = sphi 0, %s45
    %s60 = sphi 0, %s46
    %s64 = sphi 0, %s64
    %s66 = sphi 0, %s64
    %s67 = sphi 0, %s66
    %s81 = sphi 0, %s67
    %s87 = sphi 0, %s89
    %s90 = sphi 0, %s87
    %s91 = sphi 0, %s90
    %s107 = sphi 0, %s91
  $region4: #{_lambda_.7} parent=0 // loop_header_branch
    %12 = sbr.rel (%p10) target = $region8
  $region5: #{_lambda_.7} parent=0 // loop_body
    %s14 = ssub.s32 %s9, 1
    %s15 = ssub.s32 %s9, 2
    %s16 = sadd.s32 %s9, 1
    %s17 = ssub.s32 %s9, %s16
    %p18 = scmp.eq.s32.totalorder %s17, 0
    %s20 = sadd.s32 %s19, 1
    %s21 = scalar_select %p18, %s19, %s20
    %p24 = pneg %p18
    %p25 = scmp.eq.s32.totalorder %s9, 1
    %p26 = por %p24, %p25
    %p27 = scmp.ne.s32.totalorder %s19, %s22
    %p28 = scmp.eq.s32.totalorder %s9, 0
    %p29 = por %p27, %p28
    %p30 = scmp.ne.s32.totalorder %s19, %s22
    %p31 = scmp.eq.s32.totalorder %s14, 1
    %p32 = por %p30, %p31
    %p33 = scmp.ne.s32.totalorder %s22, %s23
    %p34 = scmp.eq.s32.totalorder %s14, 0
    %p35 = por %p33, %p34
    %p36 = scmp.ne.s32.totalorder %s22, %s23
    %p37 = scmp.eq.s32.totalorder %s15, 1
    %p38 = por %p36, %p37
    %p40 = scmp.ne.s32.totalorder %s23, %s39
    %p41 = scmp.eq.s32.totalorder %s15, 0
    %p42 = por %p40, %p41
    %s44 = sadd.s32 %s43, 1
    %p47 = scmp.eq.s32.totalorder %s9, 1
    %p48 = scmp.ne.s32.totalorder %s43, %s45
    %p49 = scmp.eq.s32.totalorder %s9, 0
    %p50 = por %p48, %p49
    %p51 = scmp.ne.s32.totalorder %s43, %s45
    %p52 = scmp.eq.s32.totalorder %s14, 1
    %p53 = por %p51, %p52
    %p54 = scmp.ne.s32.totalorder %s45, %s46
    %p55 = scmp.eq.s32.totalorder %s14, 0
    %p56 = por %p54, %p55
    %p57 = scmp.ne.s32.totalorder %s45, %s46
    %p58 = scmp.eq.s32.totalorder %s15, 1
    %p59 = por %p57, %p58
    %p61 = scmp.ne.s32.totalorder %s46, %s60
    %p62 = scmp.eq.s32.totalorder %s15, 0
    %p63 = por %p61, %p62
    %s65 = sadd.s32 %s64, 1
    %p68 = scmp.eq.s32.totalorder %s9, 1
    %p69 = scmp.ne.s32.totalorder %s64, %s66
    %p70 = scmp.eq.s32.totalorder %s9, 0
    %p71 = por %p69, %p70
    %p72 = scmp.ne.s32.totalorder %s64, %s66
    %p73 = scmp.eq.s32.totalorder %s14, 1
    %p74 = por %p72, %p73
    %p75 = scmp.ne.s32.totalorder %s66, %s67
    %p76 = scmp.eq.s32.totalorder %s14, 0
    %p77 = por %p75, %p76
    %p78 = scmp.ne.s32.totalorder %s66, %s67
    %p79 = scmp.eq.s32.totalorder %s15, 1
    %p80 = por %p78, %p79
    %p82 = scmp.ne.s32.totalorder %s67, %s81
    %p83 = scmp.eq.s32.totalorder %s15, 0
    %p84 = por %p82, %p83
    %s85 = ssub.s32 %s9, %s16
    %p86 = scmp.eq.s32.totalorder %s85, 0
    %s88 = sadd.s32 %s87, 1
    %s89 = scalar_select %p86, %s87, %s88
    %p92 = pneg %p86
    %p93 = scmp.eq.s32.totalorder %s9, 1
    %p94 = por %p92, %p93
    %p95 = scmp.ne.s32.totalorder %s87, %s90
    %p96 = scmp.eq.s32.totalorder %s9, 0
    %p97 = por %p95, %p96
    %p98 = scmp.ne.s32.totalorder %s87, %s90
    %p99 = scmp.eq.s32.totalorder %s14, 1
    %p100 = por %p98, %p99
    %p101 = scmp.ne.s32.totalorder %s90, %s91
    %p102 = scmp.eq.s32.totalorder %s14, 0
    %p103 = por %p101, %p102
    %p104 = scmp.ne.s32.totalorder %s90, %s91
    %p105 = scmp.eq.s32.totalorder %s15, 1
    %p106 = por %p104, %p105
    %p108 = scmp.ne.s32.totalorder %s91, %s107
    %p109 = scmp.eq.s32.totalorder %s15, 0
    %p110 = por %p108, %p109
    %p111 = scmp.le.s32.totalorder 1, %s9
    %p112 = scmp.lt.s32.totalorder %s9, 3
    %p113 = pnand %p111, %p112
    %p114 = pneg %p113
    // Predicated region
    $region9: #{_lambda_.7} parent=5 // pred_check
      _
    $region10: #{_lambda_.7} parent=5 // pred_check_branch
      %116 = sbr.rel (%p113) target = $region12
    $region11: #{_lambda_.7} parent=5 // pred_region
      %s117 = ssub.s32 %s9, 1
      // Predicated region
      $region13: #{_lambda_.7} parent=11 // pred_check
        %p118 = pneg %p56
      $region14: #{_lambda_.7} parent=11 // pred_check_branch
        %120 = sbr.rel (%p118) target = $region16
      $region15: #{_lambda_.7} parent=11 // pred_region
        _
      $region16: #{_lambda_.7} parent=11 // pred_fallthru
        _
      // Predicated region
      $region17: #{_lambda_.7} parent=11 // pred_check
        %p121 = pneg %p77
      $region18: #{_lambda_.7} parent=11 // pred_check_branch
        %123 = sbr.rel (%p121) target = $region20
      $region19: #{_lambda_.7} parent=11 // pred_region
        _
      $region20: #{_lambda_.7} parent=11 // pred_fallthru
        _
    $region12: #{_lambda_.7} parent=5 // pred_fallthru
      _
    %p124 = scmp.lt.s32.totalorder %s9, 2
    // Predicated region
    $region21: #{_lambda_.7} parent=5 // pred_check
      %p125 = pneg %p124
    $region22: #{_lambda_.7} parent=5 // pred_check_branch
      %127 = sbr.rel (%p125) target = $region24
    $region23: #{_lambda_.7} parent=5 // pred_region
      // Predicated region
      $region25: #{_lambda_.7} parent=23 // pred_check
        %p128 = pneg %p29
      $region26: #{_lambda_.7} parent=23 // pred_check_branch
        %130 = sbr.rel (%p128) target = $region28
      $region27: #{_lambda_.7} parent=23 // pred_region
        %s131 = smul.u32 2, %s9
        %p132 = scmp.lt.s32.totalorder %s131, 3
        %s133 = scalar_select %p132, %s131, 3
        %s134 = smul.addr %s133, 3
        %s135 = smul.addr %s134, 4
        %s136 = scalar_lea.vmem %s0, %s135
        %s137 = smul.u32 2, %s9
      $region28: #{_lambda_.7} parent=23 // pred_fallthru
        _
    $region24: #{_lambda_.7} parent=5 // pred_fallthru
      _
    %p138 = scmp.le.s32.totalorder 1, %s9
    %p139 = scmp.lt.s32.totalorder %s9, 3
    %p140 = pnand %p138, %p139
    %p141 = pneg %p140
    // Predicated region
    $region29: #{_lambda_.7} parent=5 // pred_check
      _
    $region30: #{_lambda_.7} parent=5 // pred_check_branch
      %143 = sbr.rel (%p140) target = $region32
    $region31: #{_lambda_.7} parent=5 // pred_region
      %s144 = ssub.s32 %s9, 1
      %s145 = smul.u32 2, %s14
      %p146 = scmp.lt.s32.totalorder %s145, 3
      %s147 = scalar_select %p146, %s145, 3
      %s148 = smul.addr %s147, 3
      %s149 = smul.addr %s148, 4
      %s150 = scalar_lea.vmem %s0, %s149
      %p151 = pneg %p35
      %p152 = pneg %p32
      %p153 = pneg %p56
      %p154 = pneg %p53
      %p155 = pneg %p77
      %p156 = pneg %p74
      %p157 = pneg %p103
      %p158 = pneg %p100
      %s159 = smul.u32 2, %s14
      %p160 = scmp.lt.s32.totalorder %s159, 3
      %s161 = scalar_select %p160, %s159, 3
      %s162 = smul.addr %s161, 4
      %s163 = scalar_lea.vmem %s3, %s162
      %s164 = smul.u32 2, %s14
      %p165 = scmp.lt.s32.totalorder %s164, 3
      %s166 = scalar_select %p165, %s164, 3
      %s167 = smul.addr %s166, 3
      %s168 = smul.addr %s167, 4
      %s169 = scalar_lea.vmem %s0, %s168
      %s170 = smul.u32 2, %s14
      %s171 = smul.u32 2, %s14
      %p172 = scmp.lt.s32.totalorder %s171, 3
      %s173 = scalar_select %p172, %s171, 3
      %s174 = smul.addr %s173, 4
      %s175 = scalar_lea.vmem %s3, %s174
      %s176 = smul.u32 2, %s14
      %v178 = vld [vmem:[%s169] sm:$0xff]
      %v179 = vld [vmem:[%s169 + $0x8] sm:$0xf]
      %v180 = vld [vmem:[%s169 + $0xc] sm:$0xff]
      %v181 = vld [vmem:[%s169 + $0x14] sm:$0xf]
      %v182 = vld [vmem:[%s1] sm:$0xf]
      %v183 = vld [vmem:[%s1 + $0x4] sm:$0xf]
      %v184 = vld [vmem:[%s1 + $0x8] sm:$0xf]
      %v185 = vld [vmem:[%s1 + $0xc] sm:$0xf]
      %v186 = vld [vmem:[%s1 + $0x10] sm:$0xf]
      %v187 = vld [vmem:[%s1 + $0x14] sm:$0xf]
      %v188 = vld [vmem:[%s1 + $0x18] sm:$0xf]
      %v189 = vld [vmem:[%s1 + $0x1c] sm:$0xf]
      %v190 = vld [vmem:[%s1 + $0x20] sm:$0xf]
      %v191 = vld [vmem:[%s1 + $0x24] sm:$0xf]
      %v192 = vld [vmem:[%s1 + $0x28] sm:$0xf]
      %v193 = vld [vmem:[%s1 + $0x2c] sm:$0xf]
      %v194 = vld [vmem:[%s1 + $0x30] sm:$0xf]
      %v195 = vld [vmem:[%s1 + $0x34] sm:$0xf]
      %v196 = vld [vmem:[%s1 + $0x38] sm:$0xf]
      %v197 = vld [vmem:[%s1 + $0x3c] sm:$0xf]
      %v198 = vld [vmem:[%s1 + $0x40] sm:$0xf]
      %v199 = vld [vmem:[%s1 + $0x44] sm:$0xf]
      %v200 = vld [vmem:[%s1 + $0x48] sm:$0xf]
      %v201 = vld [vmem:[%s1 + $0x4c] sm:$0xf]
      %v202 = vld [vmem:[%s1 + $0x50] sm:$0xf]
      %v203 = vld [vmem:[%s1 + $0x54] sm:$0xf]
      %v204 = vld [vmem:[%s1 + $0x58] sm:$0xf]
      %v205 = vld [vmem:[%s1 + $0x5c] sm:$0xf]
      %v206 = vld [vmem:[%s1 + $0x60] sm:$0xf]
      %v207 = vld [vmem:[%s1 + $0x64] sm:$0xf]
      %v208 = vld [vmem:[%s1 + $0x68] sm:$0xf]
      %v209 = vld [vmem:[%s1 + $0x6c] sm:$0xf]
      %v210 = vld [vmem:[%s1 + $0x70] sm:$0xf]
      %v211 = vld [vmem:[%s1 + $0x74] sm:$0xf]
      %v212 = vld [vmem:[%s1 + $0x78] sm:$0xf]
      %v213 = vld [vmem:[%s1 + $0x7c] sm:$0xf]
      %v214 = vld [vmem:[%s1 + $0x80] sm:$0xf]
      %v215 = vld [vmem:[%s1 + $0x84] sm:$0xf]
      %v216 = vld [vmem:[%s1 + $0x88] sm:$0xf]
      %v217 = vld [vmem:[%s1 + $0x8c] sm:$0xf]
      %v218 = vld [vmem:[%s2] sm:$0x1]
      %v220 = vperm.slane %v218, 0
      %v226 = vunpack.c.l.b16 %v178
      %v227 = vunpack.c.h.b16 %v178
      %v228 = vunpack.c.l.b16 %v179
      %v229 = vunpack.c.l.b16 %v180
      %v230 = vunpack.c.h.b16 %v180
      %v231 = vunpack.c.l.b16 %v181
      %v232 = vpack.c.b16 %v229, %v226
      %v233 = vpack.c.b16 %v230, %v227
      %v234 = vpack.c.b16 %v231, %v228
      %v273 = vunpack.c.l.b16 %v182
      %v274 = vunpack.c.l.b16 %v183
      %v275 = vunpack.c.l.b16 %v184
      %v276 = vunpack.c.l.b16 %v185
      %v277 = vunpack.c.l.b16 %v186
      %v278 = vunpack.c.l.b16 %v187
      %v279 = vunpack.c.l.b16 %v188
      %v280 = vunpack.c.l.b16 %v189
      %v281 = vunpack.c.l.b16 %v190
      %v282 = vunpack.c.l.b16 %v191
      %v283 = vunpack.c.l.b16 %v192
      %v284 = vunpack.c.l.b16 %v193
      %v285 = vunpack.c.l.b16 %v194
      %v286 = vunpack.c.l.b16 %v195
      %v287 = vunpack.c.l.b16 %v196
      %v288 = vunpack.c.l.b16 %v197
      %v289 = vunpack.c.l.b16 %v198
      %v290 = vunpack.c.l.b16 %v199
      %v291 = vunpack.c.l.b16 %v200
      %v292 = vunpack.c.l.b16 %v201
      %v293 = vunpack.c.l.b16 %v202
      %v294 = vunpack.c.l.b16 %v203
      %v295 = vunpack.c.l.b16 %v204
      %v296 = vunpack.c.l.b16 %v205
      %v297 = vunpack.c.l.b16 %v206
      %v298 = vunpack.c.l.b16 %v207
      %v299 = vunpack.c.l.b16 %v208
      %v300 = vunpack.c.l.b16 %v209
      %v301 = vunpack.c.l.b16 %v210
      %v302 = vunpack.c.l.b16 %v211
      %v303 = vunpack.c.l.b16 %v212
      %v304 = vunpack.c.l.b16 %v213
      %v305 = vunpack.c.l.b16 %v214
      %v306 = vunpack.c.l.b16 %v215
      %v307 = vunpack.c.l.b16 %v216
      %v308 = vunpack.c.l.b16 %v217
      %v309 = vpack.c.b16 %v274, %v273
      %v310 = vpack.c.b16 %v276, %v275
      %v311 = vpack.c.b16 %v278, %v277
      %v312 = vpack.c.b16 %v280, %v279
      %v313 = vpack.c.b16 %v282, %v281
      %v314 = vpack.c.b16 %v284, %v283
      %v315 = vpack.c.b16 %v286, %v285
      %v316 = vpack.c.b16 %v288, %v287
      %v317 = vpack.c.b16 %v290, %v289
      %v318 = vpack.c.b16 %v292, %v291
      %v319 = vpack.c.b16 %v294, %v293
      %v320 = vpack.c.b16 %v296, %v295
      %v321 = vpack.c.b16 %v298, %v297
      %v322 = vpack.c.b16 %v300, %v299
      %v323 = vpack.c.b16 %v302, %v301
      %v324 = vpack.c.b16 %v304, %v303
      %v325 = vpack.c.b16 %v306, %v305
      %v326 = vpack.c.b16 %v308, %v307
      %vm345 = vcmask 261120
      %v347 = vsel %vm345, %v234, 0
      %349 = vmatpush.bf16.msra.mxu0 %v316
      %350 = vmatpush.bf16.msra.mxu0 %v315
      %351 = vmatpush.bf16.msra.mxu0 %v314
      %352 = vmatpush.bf16.msra.mxu0 %v313
      %353 = vmatpush.bf16.msra.mxu0 %v312
      %354 = vmatpush.bf16.msra.mxu0 %v311
      %355 = vmatpush.bf16.msra.mxu0 %v310
      %356 = vmatpush.bf16.msra.mxu0 %v309
      %357 = vmatmul.bf16.gmra.mxu0 %v232
      %v358 = vpop.f32.mrf.mxu0
      %v359 = vadd.f32 %v220, %v358
      %v360 = vpop.f32.mrf.mxu0
      %v361 = vadd.f32 %v220, %v360
      %362 = vdwg.mxu0
      %363 = vmatpush.bf16.msra.mxu0 %v324
      %364 = vmatpush.bf16.msra.mxu0 %v323
      %365 = vmatpush.bf16.msra.mxu0 %v322
      %366 = vmatpush.bf16.msra.mxu0 %v321
      %367 = vmatpush.bf16.msra.mxu0 %v320
      %368 = vmatpush.bf16.msra.mxu0 %v319
      %369 = vmatpush.bf16.msra.mxu0 %v318
      %370 = vmatpush.bf16.msra.mxu0 %v317
      %371 = vmatmul.bf16.gmra.mxu0 %v233
      %v372 = vpop.f32.mrf.mxu0
      %v373 = vadd.f32 %v359, %v372
      %v374 = vpop.f32.mrf.mxu0
      %v375 = vadd.f32 %v361, %v374
      %376 = vdwg.mxu0
      %377 = vmatpush.bf16.msra.mxu0 0
      %378 = vmatpush.bf16.msra.mxu0 0
      %379 = vmatpush.bf16.msra.mxu0 0
      %380 = vmatpush.bf16.msra.mxu0 0
      %381 = vmatpush.bf16.msra.mxu0 0
      %382 = vmatpush.bf16.msra.mxu0 0
      %383 = vmatpush.bf16.msra.mxu0 %v326
      %384 = vmatpush.bf16.msra.mxu0 %v325
      %385 = vmatmul.bf16.gmra.mxu0 %v347
      %v386 = vpop.f32.mrf.mxu0
      %v387 = vadd.f32 %v373, %v386
      %v388 = vpop.f32.mrf.mxu0
      %v389 = vadd.f32 %v375, %v388
      %390 = vdwg.mxu0
      %v391 = vmax.f32 %v387, 0.0
      %v392 = vmax.f32 %v389, 0.0
      %v393 = vpack.c.bf16 %v391, %v391
      %v394 = vpack.c.bf16 %v392, %v392
      %vm395 = vcmask 257024
      %396 = vst.msk [vmem:[%s175] sm:$0xf] %vm395, %v393
      %397 = vst.msk [vmem:[%s175 + $0x4] sm:$0xf] %vm395, %v394
      %s398 = smul.u32 2, %s14
      %p399 = scmp.lt.s32.totalorder %s398, 3
      %s400 = scalar_select %p399, %s398, 3
      %s401 = smul.addr %s400, 4
      %s402 = scalar_lea.vmem %s3, %s401
      // Predicated region
      $region33: #{_lambda_.7} parent=31 // pred_check
        %p403 = pneg %p100
      $region34: #{_lambda_.7} parent=31 // pred_check_branch
        %405 = sbr.rel (%p403) target = $region36
      $region35: #{_lambda_.7} parent=31 // pred_region
        %s406 = smul.u32 2, %s14
      $region36: #{_lambda_.7} parent=31 // pred_fallthru
        _
    $region32: #{_lambda_.7} parent=5 // pred_fallthru
      _
    %p407 = scmp.le.s32.totalorder 2, %s9
    // Predicated region
    $region37: #{_lambda_.7} parent=5 // pred_check
      %p408 = pneg %p407
    $region38: #{_lambda_.7} parent=5 // pred_check_branch
      %410 = sbr.rel (%p408) target = $region40
    $region39: #{_lambda_.7} parent=5 // pred_region
      %s411 = ssub.s32 %s9, 2
      // Predicated region
      $region41: #{_lambda_.7} parent=39 // pred_check
        %p412 = pneg %p106
      $region42: #{_lambda_.7} parent=39 // pred_check_branch
        %414 = sbr.rel (%p412) target = $region44
      $region43: #{_lambda_.7} parent=39 // pred_region
        %s415 = smul.u32 2, %s15
        %p416 = scmp.lt.s32.totalorder %s415, 3
        %s417 = scalar_select %p416, %s415, 3
        %s418 = smul.addr %s417, 4
        %s419 = scalar_lea.vmem %s3, %s418
      $region44: #{_lambda_.7} parent=39 // pred_fallthru
        _
    $region40: #{_lambda_.7} parent=5 // pred_fallthru
      _
  $region6: #{_lambda_.7} parent=0 // loop_footer
    %s13 = sadd.s32 1, %s9
  $region7: #{_lambda_.7} parent=0 // loop_footer_branch
    %8 = sbr.rel target = $region3
  $region8: #{_lambda_.7} parent=0 // loop_exit
    _

// kernel: _lambda_.8
$region0: #{_lambda_.8}
  #allocation0 [shape = 'u32[]', space=smem, size = 0x4, offset = 0x4, fixed_abs, tag = 'smem constant byte address 0x4 - core index']
  #allocation1 [shape = 'u32[72,128]{1,0:T(1,128)}', space=vmem, size = 0x9000, scoped, tag = 'internal scratch']
  %s0 = inlined_call_operand.vmem [shape: bf16[2,3,96], index: 0, kind: input, shape index: {}]
  %s1 = inlined_call_operand.vmem [shape: bf16[96,32], index: 1, kind: input, shape index: {}]
  %s2 = inlined_call_operand.vmem [shape: f32[1,32], index: 2, kind: input, shape index: {}]
  %s3 = inlined_call_operand.vmem [shape: f32[1,3,32], index: 3, kind: input, shape index: {}]
  %s4 = inlined_call_operand.vmem [shape: f32[2,3,1], index: 4, kind: input, shape index: {}]
  %s5 = inlined_call_operand.vmem [shape: bf16[2,3,32], index: 5, kind: output, shape index: {}]
  %s6 = sld [smem:[#allocation0]]
  $region53: #{_lambda_.8} parent=0
    _
  %s8 = ssub.s32 1, %s6
  %s9 = scalar_select 0, %s8, %s6
  loop: start=0, step=1, limit=4
  $region2: #{_lambda_.8} parent=0 // loop_pre_header
    _
  $region3: #{_lambda_.8} parent=0 // loop_header
    %s11 = sphi 0, %s15
    %p12 = scmp.ge.s32.totalorder %s11, 4
    %s21 = sphi 0, %s23
    %s24 = sphi 0, %s21
    %s25 = sphi 0, %s24
    %s41 = sphi 0, %s25
    %s45 = sphi 0, %s45
    %s47 = sphi 0, %s45
    %s48 = sphi 0, %s47
    %s62 = sphi 0, %s48
    %s66 = sphi 0, %s66
    %s68 = sphi 0, %s66
    %s69 = sphi 0, %s68
    %s83 = sphi 0, %s69
    %s87 = sphi 0, %s87
    %s89 = sphi 0, %s87
    %s90 = sphi 0, %s89
    %s104 = sphi 0, %s90
    %s110 = sphi 0, %s112
    %s113 = sphi 0, %s110
    %s114 = sphi 0, %s113
    %s130 = sphi 0, %s114
    %s136 = sphi 0, %s138
    %s139 = sphi 0, %s136
    %s140 = sphi 0, %s139
    %s156 = sphi 0, %s140
  $region4: #{_lambda_.8} parent=0 // loop_header_branch
    %14 = sbr.rel (%p12) target = $region8
  $region5: #{_lambda_.8} parent=0 // loop_body
    %s16 = ssub.s32 %s11, 1
    %s17 = ssub.s32 %s11, 2
    %s18 = sadd.s32 %s11, 1
    %s19 = ssub.s32 %s11, %s18
    %p20 = scmp.eq.s32.totalorder %s19, 0
    %s22 = sadd.s32 %s21, 1
    %s23 = scalar_select %p20, %s21, %s22
    %p26 = pneg %p20
    %p27 = scmp.eq.s32.totalorder %s11, 1
    %p28 = por %p26, %p27
    %p29 = scmp.ne.s32.totalorder %s21, %s24
    %p30 = scmp.eq.s32.totalorder %s11, 0
    %p31 = por %p29, %p30
    %p32 = scmp.ne.s32.totalorder %s21, %s24
    %p33 = scmp.eq.s32.totalorder %s16, 1
    %p34 = por %p32, %p33
    %p35 = scmp.ne.s32.totalorder %s24, %s25
    %p36 = scmp.eq.s32.totalorder %s16, 0
    %p37 = por %p35, %p36
    %p38 = scmp.ne.s32.totalorder %s24, %s25
    %p39 = scmp.eq.s32.totalorder %s17, 1
    %p40 = por %p38, %p39
    %p42 = scmp.ne.s32.totalorder %s25, %s41
    %p43 = scmp.eq.s32.totalorder %s17, 0
    %p44 = por %p42, %p43
    %s46 = sadd.s32 %s45, 1
    %p49 = scmp.eq.s32.totalorder %s11, 1
    %p50 = scmp.ne.s32.totalorder %s45, %s47
    %p51 = scmp.eq.s32.totalorder %s11, 0
    %p52 = por %p50, %p51
    %p53 = scmp.ne.s32.totalorder %s45, %s47
    %p54 = scmp.eq.s32.totalorder %s16, 1
    %p55 = por %p53, %p54
    %p56 = scmp.ne.s32.totalorder %s47, %s48
    %p57 = scmp.eq.s32.totalorder %s16, 0
    %p58 = por %p56, %p57
    %p59 = scmp.ne.s32.totalorder %s47, %s48
    %p60 = scmp.eq.s32.totalorder %s17, 1
    %p61 = por %p59, %p60
    %p63 = scmp.ne.s32.totalorder %s48, %s62
    %p64 = scmp.eq.s32.totalorder %s17, 0
    %p65 = por %p63, %p64
    %s67 = sadd.s32 %s66, 1
    %p70 = scmp.eq.s32.totalorder %s11, 1
    %p71 = scmp.ne.s32.totalorder %s66, %s68
    %p72 = scmp.eq.s32.totalorder %s11, 0
    %p73 = por %p71, %p72
    %p74 = scmp.ne.s32.totalorder %s66, %s68
    %p75 = scmp.eq.s32.totalorder %s16, 1
    %p76 = por %p74, %p75
    %p77 = scmp.ne.s32.totalorder %s68, %s69
    %p78 = scmp.eq.s32.totalorder %s16, 0
    %p79 = por %p77, %p78
    %p80 = scmp.ne.s32.totalorder %s68, %s69
    %p81 = scmp.eq.s32.totalorder %s17, 1
    %p82 = por %p80, %p81
    %p84 = scmp.ne.s32.totalorder %s69, %s83
    %p85 = scmp.eq.s32.totalorder %s17, 0
    %p86 = por %p84, %p85
    %s88 = sadd.s32 %s87, 1
    %p91 = scmp.eq.s32.totalorder %s11, 1
    %p92 = scmp.ne.s32.totalorder %s87, %s89
    %p93 = scmp.eq.s32.totalorder %s11, 0
    %p94 = por %p92, %p93
    %p95 = scmp.ne.s32.totalorder %s87, %s89
    %p96 = scmp.eq.s32.totalorder %s16, 1
    %p97 = por %p95, %p96
    %p98 = scmp.ne.s32.totalorder %s89, %s90
    %p99 = scmp.eq.s32.totalorder %s16, 0
    %p100 = por %p98, %p99
    %p101 = scmp.ne.s32.totalorder %s89, %s90
    %p102 = scmp.eq.s32.totalorder %s17, 1
    %p103 = por %p101, %p102
    %p105 = scmp.ne.s32.totalorder %s90, %s104
    %p106 = scmp.eq.s32.totalorder %s17, 0
    %p107 = por %p105, %p106
    %s108 = ssub.s32 %s11, %s18
    %p109 = scmp.eq.s32.totalorder %s108, 0
    %s111 = sadd.s32 %s110, 1
    %s112 = scalar_select %p109, %s110, %s111
    %p115 = pneg %p109
    %p116 = scmp.eq.s32.totalorder %s11, 1
    %p117 = por %p115, %p116
    %p118 = scmp.ne.s32.totalorder %s110, %s113
    %p119 = scmp.eq.s32.totalorder %s11, 0
    %p120 = por %p118, %p119
    %p121 = scmp.ne.s32.totalorder %s110, %s113
    %p122 = scmp.eq.s32.totalorder %s16, 1
    %p123 = por %p121, %p122
    %p124 = scmp.ne.s32.totalorder %s113, %s114
    %p125 = scmp.eq.s32.totalorder %s16, 0
    %p126 = por %p124, %p125
    %p127 = scmp.ne.s32.totalorder %s113, %s114
    %p128 = scmp.eq.s32.totalorder %s17, 1
    %p129 = por %p127, %p128
    %p131 = scmp.ne.s32.totalorder %s114, %s130
    %p132 = scmp.eq.s32.totalorder %s17, 0
    %p133 = por %p131, %p132
    %s134 = ssub.s32 %s11, %s18
    %p135 = scmp.eq.s32.totalorder %s134, 0
    %s137 = sadd.s32 %s136, 1
    %s138 = scalar_select %p135, %s136, %s137
    %p141 = pneg %p135
    %p142 = scmp.eq.s32.totalorder %s11, 1
    %p143 = por %p141, %p142
    %p144 = scmp.ne.s32.totalorder %s136, %s139
    %p145 = scmp.eq.s32.totalorder %s11, 0
    %p146 = por %p144, %p145
    %p147 = scmp.ne.s32.totalorder %s136, %s139
    %p148 = scmp.eq.s32.totalorder %s16, 1
    %p149 = por %p147, %p148
    %p150 = scmp.ne.s32.totalorder %s139, %s140
    %p151 = scmp.eq.s32.totalorder %s16, 0
    %p152 = por %p150, %p151
    %p153 = scmp.ne.s32.totalorder %s139, %s140
    %p154 = scmp.eq.s32.totalorder %s17, 1
    %p155 = por %p153, %p154
    %p157 = scmp.ne.s32.totalorder %s140, %s156
    %p158 = scmp.eq.s32.totalorder %s17, 0
    %p159 = por %p157, %p158
    %p160 = scmp.le.s32.totalorder 1, %s11
    %p161 = scmp.lt.s32.totalorder %s11, 3
    %p162 = pnand %p160, %p161
    %p163 = pneg %p162
    // Predicated region
    $region9: #{_lambda_.8} parent=5 // pred_check
      _
    $region10: #{_lambda_.8} parent=5 // pred_check_branch
      %165 = sbr.rel (%p162) target = $region12
    $region11: #{_lambda_.8} parent=5 // pred_region
      %s166 = ssub.s32 %s11, 1
      // Predicated region
      $region13: #{_lambda_.8} parent=11 // pred_check
        %p167 = pneg %p58
      $region14: #{_lambda_.8} parent=11 // pred_check_branch
        %169 = sbr.rel (%p167) target = $region16
      $region15: #{_lambda_.8} parent=11 // pred_region
        _
      $region16: #{_lambda_.8} parent=11 // pred_fallthru
        _
      // Predicated region
      $region17: #{_lambda_.8} parent=11 // pred_check
        %p170 = pneg %p79
      $region18: #{_lambda_.8} parent=11 // pred_check_branch
        %172 = sbr.rel (%p170) target = $region20
      $region19: #{_lambda_.8} parent=11 // pred_region
        _
      $region20: #{_lambda_.8} parent=11 // pred_fallthru
        _
      // Predicated region
      $region21: #{_lambda_.8} parent=11 // pred_check
        %p173 = pneg %p100
      $region22: #{_lambda_.8} parent=11 // pred_check_branch
        %175 = sbr.rel (%p173) target = $region24
      $region23: #{_lambda_.8} parent=11 // pred_region
        _
      $region24: #{_lambda_.8} parent=11 // pred_fallthru
        _
    $region12: #{_lambda_.8} parent=5 // pred_fallthru
      _
    %p176 = scmp.lt.s32.totalorder %s11, 2
    // Predicated region
    $region25: #{_lambda_.8} parent=5 // pred_check
      %p177 = pneg %p176
    $region26: #{_lambda_.8} parent=5 // pred_check_branch
      %179 = sbr.rel (%p177) target = $region28
    $region27: #{_lambda_.8} parent=5 // pred_region
      // Predicated region
      $region29: #{_lambda_.8} parent=27 // pred_check
        %p180 = pneg %p31
      $region30: #{_lambda_.8} parent=27 // pred_check_branch
        %182 = sbr.rel (%p180) target = $region32
      $region31: #{_lambda_.8} parent=27 // pred_region
        %p183 = scmp.lt.s32.totalorder %s11, 1
        %s184 = scalar_select %p183, %s11, 1
        %s185 = smul.addr %s184, 2
        %s186 = scalar_lea.vmem %s0, %s185
      $region32: #{_lambda_.8} parent=27 // pred_fallthru
        _
      // Predicated region
      $region33: #{_lambda_.8} parent=27 // pred_check
        %p187 = pneg %p120
      $region34: #{_lambda_.8} parent=27 // pred_check_branch
        %189 = sbr.rel (%p187) target = $region36
      $region35: #{_lambda_.8} parent=27 // pred_region
        %p190 = scmp.lt.s32.totalorder %s11, 1
        %s191 = scalar_select %p190, %s11, 1
        %s192 = smul.addr %s191, 4
        %s193 = scalar_lea.vmem %s4, %s192
      $region36: #{_lambda_.8} parent=27 // pred_fallthru
        _
    $region28: #{_lambda_.8} parent=5 // pred_fallthru
      _
    %p194 = scmp.le.s32.totalorder 1, %s11
    %p195 = scmp.lt.s32.totalorder %s11, 3
    %p196 = pnand %p194, %p195
    %p197 = pneg %p196
    // Predicated region
    $region37: #{_lambda_.8} parent=5 // pred_check
      _
    $region38: #{_lambda_.8} parent=5 // pred_check_branch
      %199 = sbr.rel (%p196) target = $region40
    $region39: #{_lambda_.8} parent=5 // pred_region
      %s200 = ssub.s32 %s11, 1
      %p201 = scmp.lt.s32.totalorder %s16, 1
      %s202 = scalar_select %p201, %s16, 1
      %s203 = smul.addr %s202, 2
      %s204 = scalar_lea.vmem %s0, %s203
      %p205 = pneg %p37
      %p206 = pneg %p34
      %p207 = pneg %p58
      %p208 = pneg %p55
      %p209 = pneg %p79
      %p210 = pneg %p76
      %p211 = pneg %p100
      %p212 = pneg %p97
      %p213 = scmp.lt.s32.totalorder %s16, 1
      %s214 = scalar_select %p213, %s16, 1
      %s215 = smul.addr %s214, 4
      %s216 = scalar_lea.vmem %s4, %s215
      %p217 = pneg %p126
      %p218 = pneg %p123
      %p219 = pneg %p152
      %p220 = pneg %p149
      %p221 = scmp.lt.s32.totalorder %s16, 1
      %s222 = scalar_select %p221, %s16, 1
      %s223 = smul.addr %s222, 2
      %s224 = scalar_lea.vmem %s5, %s223
      %p225 = scmp.lt.s32.totalorder %s16, 1
      %s226 = scalar_select %p225, %s16, 1
      %s227 = smul.addr %s226, 2
      %s228 = scalar_lea.vmem %s0, %s227
      %p229 = scmp.lt.s32.totalorder %s16, 1
      %s230 = scalar_select %p229, %s16, 1
      %s231 = smul.addr %s230, 4
      %s232 = scalar_lea.vmem %s4, %s231
      %p233 = scmp.lt.s32.totalorder %s16, 1
      %s234 = scalar_select %p233, %s16, 1
      %s235 = smul.addr %s234, 2
      %s236 = scalar_lea.vmem %s5, %s235
      %v238 = vld [vmem:[%s228] sm:$0x3]
      %v239 = vld [vmem:[%s1] sm:$0xf]
      %v240 = vld [vmem:[%s1 + $0x4] sm:$0xf]
      %v241 = vld [vmem:[%s1 + $0x8] sm:$0xf]
      %v242 = vld [vmem:[%s1 + $0xc] sm:$0xf]
      %v243 = vld [vmem:[%s1 + $0x10] sm:$0xf]
      %v244 = vld [vmem:[%s1 + $0x14] sm:$0xf]
      %v245 = vld [vmem:[%s1 + $0x18] sm:$0xf]
      %v246 = vld [vmem:[%s1 + $0x1c] sm:$0xf]
      %v247 = vld [vmem:[%s1 + $0x20] sm:$0xf]
      %v248 = vld [vmem:[%s1 + $0x24] sm:$0xf]
      %v249 = vld [vmem:[%s1 + $0x28] sm:$0xf]
      %v250 = vld [vmem:[%s1 + $0x2c] sm:$0xf]
      %v251 = vld [vmem:[%s2] sm:$0x1]
      %v253 = vperm.slane %v251, 0
      %v267 = vunpack.c.l.b16 %v239
      %v268 = vunpack.c.l.b16 %v240
      %v269 = vunpack.c.l.b16 %v241
      %v270 = vunpack.c.l.b16 %v242
      %v271 = vunpack.c.l.b16 %v243
      %v272 = vunpack.c.l.b16 %v244
      %v273 = vunpack.c.l.b16 %v245
      %v274 = vunpack.c.l.b16 %v246
      %v275 = vunpack.c.l.b16 %v247
      %v276 = vunpack.c.l.b16 %v248
      %v277 = vunpack.c.l.b16 %v249
      %v278 = vunpack.c.l.b16 %v250
      %v279 = vpack.c.b16 %v268, %v267
      %v280 = vpack.c.b16 %v270, %v269
      %v281 = vpack.c.b16 %v272, %v271
      %v282 = vpack.c.b16 %v274, %v273
      %v283 = vpack.c.b16 %v276, %v275
      %v284 = vpack.c.b16 %v278, %v277
      %vm291 = vcmask 785408
      %v293 = vsel %vm291, %v238, 0
      %295 = vmatpush.bf16.msra.mxu0 0
      %296 = vmatpush.bf16.msra.mxu0 0
      %297 = vmatpush.bf16.msra.mxu0 %v284
      %298 = vmatpush.bf16.msra.mxu0 %v283
      %299 = vmatpush.bf16.msra.mxu0 %v282
      %300 = vmatpush.bf16.msra.mxu0 %v281
      %301 = vmatpush.bf16.msra.mxu0 %v280
      %302 = vmatpush.bf16.msra.mxu0 %v279
      %303 = vmatmul.bf16.gmra.mxu0 %v293
      %v304 = vpop.f32.mrf.mxu0
      %v305 = vadd.f32 %v253, %v304
      %v306 = vpop.f32.mrf.mxu0
      %307 = vdwg.mxu0
      %v308 = vmul.f32 %v305, 5.656854
      %v309 = vld [vmem:[%s3] sm:$0x7]
      %v310 = vadd.f32 %v308, %v309
      %v311 = vld [vmem:[%s232] sm:$0x7]
      %313 = vset.pattern.permute.xlu0 0
      %314 = vperm.xlu0 %313, %v311
      %v315 = vpop.permute.xlu0 %314
      %v317 = vmul.f32 %v310, %v315
      %v318 = vpack.c.bf16 %v317, %v317
      %vm319 = vcmask 254976
      %vm320 = vsmask.f32 1280
      %vm321 = vmand %vm319, %vm320
      %v322 = vld [vmem:[%s236] sm:$0x3]
      %v323 = vsel %vm321, %v318, %v322
      %324 = vst [vmem:[%s236] sm:$0x3] %v323
      %p325 = scmp.lt.s32.totalorder %s16, 1
      %s326 = scalar_select %p325, %s16, 1
      %s327 = smul.addr %s326, 2
      %s328 = scalar_lea.vmem %s5, %s327
      // Predicated region
      $region41: #{_lambda_.8} parent=39 // pred_check
        %p329 = pneg %p149
      $region42: #{_lambda_.8} parent=39 // pred_check_branch
        %331 = sbr.rel (%p329) target = $region44
      $region43: #{_lambda_.8} parent=39 // pred_region
        _
      $region44: #{_lambda_.8} parent=39 // pred_fallthru
        _
    $region40: #{_lambda_.8} parent=5 // pred_fallthru
      _
    %p332 = scmp.le.s32.totalorder 2, %s11
    // Predicated region
    $region45: #{_lambda_.8} parent=5 // pred_check
      %p333 = pneg %p332
    $region46: #{_lambda_.8} parent=5 // pred_check_branch
      %335 = sbr.rel (%p333) target = $region48
    $region47: #{_lambda_.8} parent=5 // pred_region
      %s336 = ssub.s32 %s11, 2
      // Predicated region
      $region49: #{_lambda_.8} parent=47 // pred_check
        %p337 = pneg %p155
      $region50: #{_lambda_.8} parent=47 // pred_check_branch
        %339 = sbr.rel (%p337) target = $region52
      $region51: #{_lambda_.8} parent=47 // pred_region
        %p340 = scmp.lt.s32.totalorder %s17, 1
        %s341 = scalar_select %p340, %s17, 1
        %s342 = smul.addr %s341, 2
        %s343 = scalar_lea.vmem %s5, %s342
      $region52: #{_lambda_.8} parent=47 // pred_fallthru
        _
    $region48: #{_lambda_.8} parent=5 // pred_fallthru
      _
  $region6: #{_lambda_.8} parent=0 // loop_footer
    %s15 = sadd.s32 1, %s11
  $region7: #{_lambda_.8} parent=0 // loop_footer_branch
    %10 = sbr.rel target = $region3
  $region8: #{_lambda_.8} parent=0 // loop_exit
    _

// kernel: _lambda_.11
$region0: #{_lambda_.11}
  #allocation0 [shape = 'u32[]', space=smem, size = 0x4, offset = 0x4, fixed_abs, tag = 'smem constant byte address 0x4 - core index']
  #allocation1 [shape = 'u32[72,128]{1,0:T(1,128)}', space=vmem, size = 0x9000, scoped, tag = 'internal scratch']
  %s0 = inlined_call_operand.vmem [shape: bf16[16,32], index: 0, kind: input, shape index: {}]
  %s1 = inlined_call_operand.vmem [shape: bf16[32,64], index: 1, kind: input, shape index: {}]
  %s2 = inlined_call_operand.vmem [shape: f32[1,64], index: 2, kind: input, shape index: {}]
  %s3 = inlined_call_operand.vmem [shape: f32[16,64], index: 3, kind: output, shape index: {}]
  %s4 = sld [smem:[#allocation0]]
  $region22: #{_lambda_.11} parent=0
    _
  %s6 = ssub.s32 1, %s4
  %s7 = scalar_select 0, %s6, %s4
  // Predicated region
  $region2: #{_lambda_.11} parent=0 // pred_check
    _
  $region3: #{_lambda_.11} parent=0 // pred_check_branch
    %9 = sbr.rel (0) target = $region5
  $region4: #{_lambda_.11} parent=0 // pred_region
    _
  $region5: #{_lambda_.11} parent=0 // pred_fallthru
    _
  // Predicated region
  $region6: #{_lambda_.11} parent=0 // pred_check
    _
  $region7: #{_lambda_.11} parent=0 // pred_check_branch
    %11 = sbr.rel (0) target = $region9
  $region8: #{_lambda_.11} parent=0 // pred_region
    _
  $region9: #{_lambda_.11} parent=0 // pred_fallthru
    _
  // Predicated region
  $region10: #{_lambda_.11} parent=0 // pred_check
    _
  $region11: #{_lambda_.11} parent=0 // pred_check_branch
    %13 = sbr.rel (0) target = $region13
  $region12: #{_lambda_.11} parent=0 // pred_region
    _
  $region13: #{_lambda_.11} parent=0 // pred_fallthru
    _
  %v15 = vld [vmem:[%s0] sm:$0xf]
  %v16 = vld [vmem:[%s0 + $0x4] sm:$0xf]
  %v17 = vld [vmem:[%s1] sm:$0xf]
  %v18 = vld [vmem:[%s1 + $0x4] sm:$0xf]
  %v19 = vld [vmem:[%s1 + $0x8] sm:$0xf]
  %v20 = vld [vmem:[%s1 + $0xc] sm:$0xf]
  %v21 = vld [vmem:[%s2] sm:$0x1]
  %v23 = vperm.slane %v21, 0
  %v27 = vunpack.c.l.b16 %v15
  %v28 = vunpack.c.l.b16 %v16
  %v29 = vpack.c.b16 %v28, %v27
  %v34 = vunpack.c.l.b16 %v17
  %v35 = vunpack.c.l.b16 %v18
  %v36 = vunpack.c.l.b16 %v19
  %v37 = vunpack.c.l.b16 %v20
  %v38 = vpack.c.b16 %v35, %v34
  %v39 = vpack.c.b16 %v37, %v36
  %vm42 = vcmask 261120
  %v44 = vsel %vm42, %v29, 0
  %46 = vmatpush.bf16.msra.mxu0 0
  %47 = vmatpush.bf16.msra.mxu0 0
  %48 = vmatpush.bf16.msra.mxu0 0
  %49 = vmatpush.bf16.msra.mxu0 0
  %50 = vmatpush.bf16.msra.mxu0 0
  %51 = vmatpush.bf16.msra.mxu0 0
  %52 = vmatpush.bf16.msra.mxu0 %v39
  %53 = vmatpush.bf16.msra.mxu0 %v38
  %54 = vmatmul.bf16.gmra.mxu0 %v44
  %v55 = vpop.f32.mrf.mxu0
  %v56 = vadd.f32 %v23, %v55
  %v57 = vpop.f32.mrf.mxu0
  %v58 = vadd.f32 %v23, %v57
  %59 = vdwg.mxu0
  %vm60 = vcmask 523264
  %v61 = vsel %vm60, %v56, -inf
  %62 = vmax.xlane.f32.xlu0 %v61
  %v63 = vpop.xlane.xlu0 %62
  %v64 = vsel %vm60, %v58, -inf
  %65 = vmax.xlane.f32.xlu0 %v64
  %v66 = vpop.xlane.xlu0 %65
  %v67 = vsub.f32 %v56, %v63
  %v68 = vsub.f32 %v58, %v66
  %v69 = vmul.f32 %v67, 1.442695
  %v70 = vpow.pop %v69
  %v71 = vmul.f32 %v68, 1.442695
  %v72 = vpow.pop %v71
  %v73 = vsel %vm60, %v70, 0.0
  %74 = vadd.xlane.f32.xlu0 %v73
  %v75 = vpop.xlane.xlu0 %74
  %v76 = vsel %vm60, %v72, 0.0
  %77 = vadd.xlane.f32.xlu0 %v76
  %v78 = vpop.xlane.xlu0 %77
  %v79 = vlog2.pop %v75
  %v80 = vmul.f32 %v79, 0.6931472
  %v81 = vlog2.pop %v78
  %v82 = vmul.f32 %v81, 0.6931472
  %v83 = vsub.f32 %v67, %v80
  %v84 = vsub.f32 %v68, %v82
  %85 = vst.msk [vmem:[%s3] sm:$0xff] %vm60, %v83
  %86 = vst.msk [vmem:[%s3 + $0x8] sm:$0xff] %vm60, %v84
  // Predicated region
  $region14: #{_lambda_.11} parent=0 // pred_check
    _
  $region15: #{_lambda_.11} parent=0 // pred_check_branch
    %88 = sbr.rel (0) target = $region17
  $region16: #{_lambda_.11} parent=0 // pred_region
    _
  $region17: #{_lambda_.11} parent=0 // pred_fallthru
    _
  // Predicated region
  $region18: #{_lambda_.11} parent=0 // pred_check
    _
  $region19: #{_lambda_.11} parent=0 // pred_check_branch
    %90 = sbr.rel (0) target = $region21
  $region20: #{_lambda_.11} parent=0 // pred_region
    _
  $region21: #{_lambda_.11} parent=0 // pred_fallthru
    _

// kernel: _lambda_.9
$region0: #{_lambda_.9}
  #allocation0 [shape = 'u32[]', space=smem, size = 0x4, offset = 0x4, fixed_abs, tag = 'smem constant byte address 0x4 - core index']
  #allocation1 [shape = 'u32[72,128]{1,0:T(1,128)}', space=vmem, size = 0x9000, scoped, tag = 'internal scratch']
  %s0 = inlined_call_operand.vmem [shape: bf16[2,3,32], index: 0, kind: input, shape index: {}]
  %s1 = inlined_call_operand.vmem [shape: f32[2,1,3], index: 1, kind: input, shape index: {}]
  %s2 = inlined_call_operand.vmem [shape: bf16[32,96], index: 2, kind: input, shape index: {}]
  %s3 = inlined_call_operand.vmem [shape: f32[1,96], index: 3, kind: input, shape index: {}]
  %s4 = inlined_call_operand.vmem [shape: bf16[32,32], index: 4, kind: input, shape index: {}]
  %s5 = inlined_call_operand.vmem [shape: f32[1,32], index: 5, kind: input, shape index: {}]
  %s6 = inlined_call_operand.vmem [shape: f32[1,32], index: 6, kind: input, shape index: {}]
  %s7 = inlined_call_operand.vmem [shape: f32[1,32], index: 7, kind: input, shape index: {}]
  %s8 = inlined_call_operand.vmem [shape: bf16[32,64], index: 8, kind: input, shape index: {}]
  %s9 = inlined_call_operand.vmem [shape: f32[1,64], index: 9, kind: input, shape index: {}]
  %s10 = inlined_call_operand.vmem [shape: bf16[64,32], index: 10, kind: input, shape index: {}]
  %s11 = inlined_call_operand.vmem [shape: f32[1,32], index: 11, kind: input, shape index: {}]
  %s12 = inlined_call_operand.vmem [shape: f32[1,32], index: 12, kind: input, shape index: {}]
  %s13 = inlined_call_operand.vmem [shape: f32[1,32], index: 13, kind: input, shape index: {}]
  %s14 = inlined_call_operand.vmem [shape: bf16[2,3,32], index: 14, kind: output, shape index: {}]
  %s15 = sld [smem:[#allocation0]]
  $region89: #{_lambda_.9} parent=0
    _
  %s17 = ssub.s32 1, %s15
  %s18 = scalar_select 0, %s17, %s15
  loop: start=0, step=1, limit=4
  $region2: #{_lambda_.9} parent=0 // loop_pre_header
    _
  $region3: #{_lambda_.9} parent=0 // loop_header
    %s20 = sphi 0, %s24
    %p21 = scmp.ge.s32.totalorder %s20, 4
    %s30 = sphi 0, %s32
    %s33 = sphi 0, %s30
    %s34 = sphi 0, %s33
    %s50 = sphi 0, %s34
    %s56 = sphi 0, %s58
    %s59 = sphi 0, %s56
    %s60 = sphi 0, %s59
    %s76 = sphi 0, %s60
    %s80 = sphi 0, %s80
    %s82 = sphi 0, %s80
    %s83 = sphi 0, %s82
    %s97 = sphi 0, %s83
    %s101 = sphi 0, %s101
    %s103 = sphi 0, %s101
    %s104 = sphi 0, %s103
    %s118 = sphi 0, %s104
    %s122 = sphi 0, %s122
    %s124 = sphi 0, %s122
    %s125 = sphi 0, %s124
    %s139 = sphi 0, %s125
    %s143 = sphi 0, %s143
    %s145 = sphi 0, %s143
    %s146 = sphi 0, %s145
    %s160 = sphi 0, %s146
    %s164 = sphi 0, %s164
    %s166 = sphi 0, %s164
    %s167 = sphi 0, %s166
    %s181 = sphi 0, %s167
    %s185 = sphi 0, %s185
    %s187 = sphi 0, %s185
    %s188 = sphi 0, %s187
    %s202 = sphi 0, %s188
    %s206 = sphi 0, %s206
    %s208 = sphi 0, %s206
    %s209 = sphi 0, %s208
    %s223 = sphi 0, %s209
    %s227 = sphi 0, %s227
    %s229 = sphi 0, %s227
    %s230 = sphi 0, %s229
    %s244 = sphi 0, %s230
    %s248 = sphi 0, %s248
    %s250 = sphi 0, %s248
    %s251 = sphi 0, %s250
    %s265 = sphi 0, %s251
    %s269 = sphi 0, %s269
    %s271 = sphi 0, %s269
    %s272 = sphi 0, %s271
    %s286 = sphi 0, %s272
    %s290 = sphi 0, %s290
    %s292 = sphi 0, %s290
    %s293 = sphi 0, %s292
    %s307 = sphi 0, %s293
    %s311 = sphi 0, %s311
    %s313 = sphi 0, %s311
    %s314 = sphi 0, %s313
    %s328 = sphi 0, %s314
    %s334 = sphi 0, %s336
    %s337 = sphi 0, %s334
    %s338 = sphi 0, %s337
    %s354 = sphi 0, %s338
  $region4: #{_lambda_.9} parent=0 // loop_header_branch
    %23 = sbr.rel (%p21) target = $region8
  $region5: #{_lambda_.9} parent=0 // loop_body
    %s25 = ssub.s32 %s20, 1
    %s26 = ssub.s32 %s20, 2
    %s27 = sadd.s32 %s20, 1
    %s28 = ssub.s32 %s20, %s27
    %p29 = scmp.eq.s32.totalorder %s28, 0
    %s31 = sadd.s32 %s30, 1
    %s32 = scalar_select %p29, %s30, %s31
    %p35 = pneg %p29
    %p36 = scmp.eq.s32.totalorder %s20, 1
    %p37 = por %p35, %p36
    %p38 = scmp.ne.s32.totalorder %s30, %s33
    %p39 = scmp.eq.s32.totalorder %s20, 0
    %p40 = por %p38, %p39
    %p41 = scmp.ne.s32.totalorder %s30, %s33
    %p42 = scmp.eq.s32.totalorder %s25, 1
    %p43 = por %p41, %p42
    %p44 = scmp.ne.s32.totalorder %s33, %s34
    %p45 = scmp.eq.s32.totalorder %s25, 0
    %p46 = por %p44, %p45
    %p47 = scmp.ne.s32.totalorder %s33, %s34
    %p48 = scmp.eq.s32.totalorder %s26, 1
    %p49 = por %p47, %p48
    %p51 = scmp.ne.s32.totalorder %s34, %s50
    %p52 = scmp.eq.s32.totalorder %s26, 0
    %p53 = por %p51, %p52
    %s54 = ssub.s32 %s20, %s27
    %p55 = scmp.eq.s32.totalorder %s54, 0
    %s57 = sadd.s32 %s56, 1
    %s58 = scalar_select %p55, %s56, %s57
    %p61 = pneg %p55
    %p62 = scmp.eq.s32.totalorder %s20, 1
    %p63 = por %p61, %p62
    %p64 = scmp.ne.s32.totalorder %s56, %s59
    %p65 = scmp.eq.s32.totalorder %s20, 0
    %p66 = por %p64, %p65
    %p67 = scmp.ne.s32.totalorder %s56, %s59
    %p68 = scmp.eq.s32.totalorder %s25, 1
    %p69 = por %p67, %p68
    %p70 = scmp.ne.s32.totalorder %s59, %s60
    %p71 = scmp.eq.s32.totalorder %s25, 0
    %p72 = por %p70, %p71
    %p73 = scmp.ne.s32.totalorder %s59, %s60
    %p74 = scmp.eq.s32.totalorder %s26, 1
    %p75 = por %p73, %p74
    %p77 = scmp.ne.s32.totalorder %s60, %s76
    %p78 = scmp.eq.s32.totalorder %s26, 0
    %p79 = por %p77, %p78
    %s81 = sadd.s32 %s80, 1
    %p84 = scmp.eq.s32.totalorder %s20, 1
    %p85 = scmp.ne.s32.totalorder %s80, %s82
    %p86 = scmp.eq.s32.totalorder %s20, 0
    %p87 = por %p85, %p86
    %p88 = scmp.ne.s32.totalorder %s80, %s82
    %p89 = scmp.eq.s32.totalorder %s25, 1
    %p90 = por %p88, %p89
    %p91 = scmp.ne.s32.totalorder %s82, %s83
    %p92 = scmp.eq.s32.totalorder %s25, 0
    %p93 = por %p91, %p92
    %p94 = scmp.ne.s32.totalorder %s82, %s83
    %p95 = scmp.eq.s32.totalorder %s26, 1
    %p96 = por %p94, %p95
    %p98 = scmp.ne.s32.totalorder %s83, %s97
    %p99 = scmp.eq.s32.totalorder %s26, 0
    %p100 = por %p98, %p99
    %s102 = sadd.s32 %s101, 1
    %p105 = scmp.eq.s32.totalorder %s20, 1
    %p106 = scmp.ne.s32.totalorder %s101, %s103
    %p107 = scmp.eq.s32.totalorder %s20, 0
    %p108 = por %p106, %p107
    %p109 = scmp.ne.s32.totalorder %s101, %s103
    %p110 = scmp.eq.s32.totalorder %s25, 1
    %p111 = por %p109, %p110
    %p112 = scmp.ne.s32.totalorder %s103, %s104
    %p113 = scmp.eq.s32.totalorder %s25, 0
    %p114 = por %p112, %p113
    %p115 = scmp.ne.s32.totalorder %s103, %s104
    %p116 = scmp.eq.s32.totalorder %s26, 1
    %p117 = por %p115, %p116
    %p119 = scmp.ne.s32.totalorder %s104, %s118
    %p120 = scmp.eq.s32.totalorder %s26, 0
    %p121 = por %p119, %p120
    %s123 = sadd.s32 %s122, 1
    %p126 = scmp.eq.s32.totalorder %s20, 1
    %p127 = scmp.ne.s32.totalorder %s122, %s124
    %p128 = scmp.eq.s32.totalorder %s20, 0
    %p129 = por %p127, %p128
    %p130 = scmp.ne.s32.totalorder %s122, %s124
    %p131 = scmp.eq.s32.totalorder %s25, 1
    %p132 = por %p130, %p131
    %p133 = scmp.ne.s32.totalorder %s124, %s125
    %p134 = scmp.eq.s32.totalorder %s25, 0
    %p135 = por %p133, %p134
    %p136 = scmp.ne.s32.totalorder %s124, %s125
    %p137 = scmp.eq.s32.totalorder %s26, 1
    %p138 = por %p136, %p137
    %p140 = scmp.ne.s32.totalorder %s125, %s139
    %p141 = scmp.eq.s32.totalorder %s26, 0
    %p142 = por %p140, %p141
    %s144 = sadd.s32 %s143, 1
    %p147 = scmp.eq.s32.totalorder %s20, 1
    %p148 = scmp.ne.s32.totalorder %s143, %s145
    %p149 = scmp.eq.s32.totalorder %s20, 0
    %p150 = por %p148, %p149
    %p151 = scmp.ne.s32.totalorder %s143, %s145
    %p152 = scmp.eq.s32.totalorder %s25, 1
    %p153 = por %p151, %p152
    %p154 = scmp.ne.s32.totalorder %s145, %s146
    %p155 = scmp.eq.s32.totalorder %s25, 0
    %p156 = por %p154, %p155
    %p157 = scmp.ne.s32.totalorder %s145, %s146
    %p158 = scmp.eq.s32.totalorder %s26, 1
    %p159 = por %p157, %p158
    %p161 = scmp.ne.s32.totalorder %s146, %s160
    %p162 = scmp.eq.s32.totalorder %s26, 0
    %p163 = por %p161, %p162
    %s165 = sadd.s32 %s164, 1
    %p168 = scmp.eq.s32.totalorder %s20, 1
    %p169 = scmp.ne.s32.totalorder %s164, %s166
    %p170 = scmp.eq.s32.totalorder %s20, 0
    %p171 = por %p169, %p170
    %p172 = scmp.ne.s32.totalorder %s164, %s166
    %p173 = scmp.eq.s32.totalorder %s25, 1
    %p174 = por %p172, %p173
    %p175 = scmp.ne.s32.totalorder %s166, %s167
    %p176 = scmp.eq.s32.totalorder %s25, 0
    %p177 = por %p175, %p176
    %p178 = scmp.ne.s32.totalorder %s166, %s167
    %p179 = scmp.eq.s32.totalorder %s26, 1
    %p180 = por %p178, %p179
    %p182 = scmp.ne.s32.totalorder %s167, %s181
    %p183 = scmp.eq.s32.totalorder %s26, 0
    %p184 = por %p182, %p183
    %s186 = sadd.s32 %s185, 1
    %p189 = scmp.eq.s32.totalorder %s20, 1
    %p190 = scmp.ne.s32.totalorder %s185, %s187
    %p191 = scmp.eq.s32.totalorder %s20, 0
    %p192 = por %p190, %p191
    %p193 = scmp.ne.s32.totalorder %s185, %s187
    %p194 = scmp.eq.s32.totalorder %s25, 1
    %p195 = por %p193, %p194
    %p196 = scmp.ne.s32.totalorder %s187, %s188
    %p197 = scmp.eq.s32.totalorder %s25, 0
    %p198 = por %p196, %p197
    %p199 = scmp.ne.s32.totalorder %s187, %s188
    %p200 = scmp.eq.s32.totalorder %s26, 1
    %p201 = por %p199, %p200
    %p203 = scmp.ne.s32.totalorder %s188, %s202
    %p204 = scmp.eq.s32.totalorder %s26, 0
    %p205 = por %p203, %p204
    %s207 = sadd.s32 %s206, 1
    %p210 = scmp.eq.s32.totalorder %s20, 1
    %p211 = scmp.ne.s32.totalorder %s206, %s208
    %p212 = scmp.eq.s32.totalorder %s20, 0
    %p213 = por %p211, %p212
    %p214 = scmp.ne.s32.totalorder %s206, %s208
    %p215 = scmp.eq.s32.totalorder %s25, 1
    %p216 = por %p214, %p215
    %p217 = scmp.ne.s32.totalorder %s208, %s209
    %p218 = scmp.eq.s32.totalorder %s25, 0
    %p219 = por %p217, %p218
    %p220 = scmp.ne.s32.totalorder %s208, %s209
    %p221 = scmp.eq.s32.totalorder %s26, 1
    %p222 = por %p220, %p221
    %p224 = scmp.ne.s32.totalorder %s209, %s223
    %p225 = scmp.eq.s32.totalorder %s26, 0
    %p226 = por %p224, %p225
    %s228 = sadd.s32 %s227, 1
    %p231 = scmp.eq.s32.totalorder %s20, 1
    %p232 = scmp.ne.s32.totalorder %s227, %s229
    %p233 = scmp.eq.s32.totalorder %s20, 0
    %p234 = por %p232, %p233
    %p235 = scmp.ne.s32.totalorder %s227, %s229
    %p236 = scmp.eq.s32.totalorder %s25, 1
    %p237 = por %p235, %p236
    %p238 = scmp.ne.s32.totalorder %s229, %s230
    %p239 = scmp.eq.s32.totalorder %s25, 0
    %p240 = por %p238, %p239
    %p241 = scmp.ne.s32.totalorder %s229, %s230
    %p242 = scmp.eq.s32.totalorder %s26, 1
    %p243 = por %p241, %p242
    %p245 = scmp.ne.s32.totalorder %s230, %s244
    %p246 = scmp.eq.s32.totalorder %s26, 0
    %p247 = por %p245, %p246
    %s249 = sadd.s32 %s248, 1
    %p252 = scmp.eq.s32.totalorder %s20, 1
    %p253 = scmp.ne.s32.totalorder %s248, %s250
    %p254 = scmp.eq.s32.totalorder %s20, 0
    %p255 = por %p253, %p254
    %p256 = scmp.ne.s32.totalorder %s248, %s250
    %p257 = scmp.eq.s32.totalorder %s25, 1
    %p258 = por %p256, %p257
    %p259 = scmp.ne.s32.totalorder %s250, %s251
    %p260 = scmp.eq.s32.totalorder %s25, 0
    %p261 = por %p259, %p260
    %p262 = scmp.ne.s32.totalorder %s250, %s251
    %p263 = scmp.eq.s32.totalorder %s26, 1
    %p264 = por %p262, %p263
    %p266 = scmp.ne.s32.totalorder %s251, %s265
    %p267 = scmp.eq.s32.totalorder %s26, 0
    %p268 = por %p266, %p267
    %s270 = sadd.s32 %s269, 1
    %p273 = scmp.eq.s32.totalorder %s20, 1
    %p274 = scmp.ne.s32.totalorder %s269, %s271
    %p275 = scmp.eq.s32.totalorder %s20, 0
    %p276 = por %p274, %p275
    %p277 = scmp.ne.s32.totalorder %s269, %s271
    %p278 = scmp.eq.s32.totalorder %s25, 1
    %p279 = por %p277, %p278
    %p280 = scmp.ne.s32.totalorder %s271, %s272
    %p281 = scmp.eq.s32.totalorder %s25, 0
    %p282 = por %p280, %p281
    %p283 = scmp.ne.s32.totalorder %s271, %s272
    %p284 = scmp.eq.s32.totalorder %s26, 1
    %p285 = por %p283, %p284
    %p287 = scmp.ne.s32.totalorder %s272, %s286
    %p288 = scmp.eq.s32.totalorder %s26, 0
    %p289 = por %p287, %p288
    %s291 = sadd.s32 %s290, 1
    %p294 = scmp.eq.s32.totalorder %s20, 1
    %p295 = scmp.ne.s32.totalorder %s290, %s292
    %p296 = scmp.eq.s32.totalorder %s20, 0
    %p297 = por %p295, %p296
    %p298 = scmp.ne.s32.totalorder %s290, %s292
    %p299 = scmp.eq.s32.totalorder %s25, 1
    %p300 = por %p298, %p299
    %p301 = scmp.ne.s32.totalorder %s292, %s293
    %p302 = scmp.eq.s32.totalorder %s25, 0
    %p303 = por %p301, %p302
    %p304 = scmp.ne.s32.totalorder %s292, %s293
    %p305 = scmp.eq.s32.totalorder %s26, 1
    %p306 = por %p304, %p305
    %p308 = scmp.ne.s32.totalorder %s293, %s307
    %p309 = scmp.eq.s32.totalorder %s26, 0
    %p310 = por %p308, %p309
    %s312 = sadd.s32 %s311, 1
    %p315 = scmp.eq.s32.totalorder %s20, 1
    %p316 = scmp.ne.s32.totalorder %s311, %s313
    %p317 = scmp.eq.s32.totalorder %s20, 0
    %p318 = por %p316, %p317
    %p319 = scmp.ne.s32.totalorder %s311, %s313
    %p320 = scmp.eq.s32.totalorder %s25, 1
    %p321 = por %p319, %p320
    %p322 = scmp.ne.s32.totalorder %s313, %s314
    %p323 = scmp.eq.s32.totalorder %s25, 0
    %p324 = por %p322, %p323
    %p325 = scmp.ne.s32.totalorder %s313, %s314
    %p326 = scmp.eq.s32.totalorder %s26, 1
    %p327 = por %p325, %p326
    %p329 = scmp.ne.s32.totalorder %s314, %s328
    %p330 = scmp.eq.s32.totalorder %s26, 0
    %p331 = por %p329, %p330
    %s332 = ssub.s32 %s20, %s27
    %p333 = scmp.eq.s32.totalorder %s332, 0
    %s335 = sadd.s32 %s334, 1
    %s336 = scalar_select %p333, %s334, %s335
    %p339 = pneg %p333
    %p340 = scmp.eq.s32.totalorder %s20, 1
    %p341 = por %p339, %p340
    %p342 = scmp.ne.s32.totalorder %s334, %s337
    %p343 = scmp.eq.s32.totalorder %s20, 0
    %p344 = por %p342, %p343
    %p345 = scmp.ne.s32.totalorder %s334, %s337
    %p346 = scmp.eq.s32.totalorder %s25, 1
    %p347 = por %p345, %p346
    %p348 = scmp.ne.s32.totalorder %s337, %s338
    %p349 = scmp.eq.s32.totalorder %s25, 0
    %p350 = por %p348, %p349
    %p351 = scmp.ne.s32.totalorder %s337, %s338
    %p352 = scmp.eq.s32.totalorder %s26, 1
    %p353 = por %p351, %p352
    %p355 = scmp.ne.s32.totalorder %s338, %s354
    %p356 = scmp.eq.s32.totalorder %s26, 0
    %p357 = por %p355, %p356
    %p358 = scmp.le.s32.totalorder 1, %s20
    %p359 = scmp.lt.s32.totalorder %s20, 3
    %p360 = pnand %p358, %p359
    %p361 = pneg %p360
    // Predicated region
    $region9: #{_lambda_.9} parent=5 // pred_check
      _
    $region10: #{_lambda_.9} parent=5 // pred_check_branch
      %363 = sbr.rel (%p360) target = $region12
    $region11: #{_lambda_.9} parent=5 // pred_region
      %s364 = ssub.s32 %s20, 1
      // Predicated region
      $region13: #{_lambda_.9} parent=11 // pred_check
        %p365 = pneg %p93
      $region14: #{_lambda_.9} parent=11 // pred_check_branch
        %367 = sbr.rel (%p365) target = $region16
      $region15: #{_lambda_.9} parent=11 // pred_region
        _
      $region16: #{_lambda_.9} parent=11 // pred_fallthru
        _
      // Predicated region
      $region17: #{_lambda_.9} parent=11 // pred_check
        %p368 = pneg %p114
      $region18: #{_lambda_.9} parent=11 // pred_check_branch
        %370 = sbr.rel (%p368) target = $region20
      $region19: #{_lambda_.9} parent=11 // pred_region
        _
      $region20: #{_lambda_.9} parent=11 // pred_fallthru
        _
      // Predicated region
      $region21: #{_lambda_.9} parent=11 // pred_check
        %p371 = pneg %p135
      $region22: #{_lambda_.9} parent=11 // pred_check_branch
        %373 = sbr.rel (%p371) target = $region24
      $region23: #{_lambda_.9} parent=11 // pred_region
        _
      $region24: #{_lambda_.9} parent=11 // pred_fallthru
        _
      // Predicated region
      $region25: #{_lambda_.9} parent=11 // pred_check
        %p374 = pneg %p156
      $region26: #{_lambda_.9} parent=11 // pred_check_branch
        %376 = sbr.rel (%p374) target = $region28
      $region27: #{_lambda_.9} parent=11 // pred_region
        _
      $region28: #{_lambda_.9} parent=11 // pred_fallthru
        _
      // Predicated region
      $region29: #{_lambda_.9} parent=11 // pred_check
        %p377 = pneg %p177
      $region30: #{_lambda_.9} parent=11 // pred_check_branch
        %379 = sbr.rel (%p377) target = $region32
      $region31: #{_lambda_.9} parent=11 // pred_region
        _
      $region32: #{_lambda_.9} parent=11 // pred_fallthru
        _
      // Predicated region
      $region33: #{_lambda_.9} parent=11 // pred_check
        %p380 = pneg %p198
      $region34: #{_lambda_.9} parent=11 // pred_check_branch
        %382 = sbr.rel (%p380) target = $region36
      $region35: #{_lambda_.9} parent=11 // pred_region
        _
      $region36: #{_lambda_.9} parent=11 // pred_fallthru
        _
      // Predicated region
      $region37: #{_lambda_.9} parent=11 // pred_check
        %p383 = pneg %p219
      $region38: #{_lambda_.9} parent=11 // pred_check_branch
        %385 = sbr.rel (%p383) target = $region40
      $region39: #{_lambda_.9} parent=11 // pred_region
        _
      $region40: #{_lambda_.9} parent=11 // pred_fallthru
        _
      // Predicated region
      $region41: #{_lambda_.9} parent=11 // pred_check
        %p386 = pneg %p240
      $region42: #{_lambda_.9} parent=11 // pred_check_branch
        %388 = sbr.rel (%p386) target = $region44
      $region43: #{_lambda_.9} parent=11 // pred_region
        _
      $region44: #{_lambda_.9} parent=11 // pred_fallthru
        _
      // Predicated region
      $region45: #{_lambda_.9} parent=11 // pred_check
        %p389 = pneg %p261
      $region46: #{_lambda_.9} parent=11 // pred_check_branch
        %391 = sbr.rel (%p389) target = $region48
      $region47: #{_lambda_.9} parent=11 // pred_region
        _
      $region48: #{_lambda_.9} parent=11 // pred_fallthru
        _
      // Predicated region
      $region49: #{_lambda_.9} parent=11 // pred_check
        %p392 = pneg %p282
      $region50: #{_lambda_.9} parent=11 // pred_check_branch
        %394 = sbr.rel (%p392) target = $region52
      $region51: #{_lambda_.9} parent=11 // pred_region
        _
      $region52: #{_lambda_.9} parent=11 // pred_fallthru
        _
      // Predicated region
      $region53: #{_lambda_.9} parent=11 // pred_check
        %p395 = pneg %p303
      $region54: #{_lambda_.9} parent=11 // pred_check_branch
        %397 = sbr.rel (%p395) target = $region56
      $region55: #{_lambda_.9} parent=11 // pred_region
        _
      $region56: #{_lambda_.9} parent=11 // pred_fallthru
        _
      // Predicated region
      $region57: #{_lambda_.9} parent=11 // pred_check
        %p398 = pneg %p324
      $region58: #{_lambda_.9} parent=11 // pred_check_branch
        %400 = sbr.rel (%p398) target = $region60
      $region59: #{_lambda_.9} parent=11 // pred_region
        _
      $region60: #{_lambda_.9} parent=11 // pred_fallthru
        _
    $region12: #{_lambda_.9} parent=5 // pred_fallthru
      _
    %p401 = scmp.lt.s32.totalorder %s20, 2
    // Predicated region
    $region61: #{_lambda_.9} parent=5 // pred_check
      %p402 = pneg %p401
    $region62: #{_lambda_.9} parent=5 // pred_check_branch
      %404 = sbr.rel (%p402) target = $region64
    $region63: #{_lambda_.9} parent=5 // pred_region
      // Predicated region
      $region65: #{_lambda_.9} parent=63 // pred_check
        %p405 = pneg %p40
      $region66: #{_lambda_.9} parent=63 // pred_check_branch
        %407 = sbr.rel (%p405) target = $region68
      $region67: #{_lambda_.9} parent=63 // pred_region
        %p408 = scmp.lt.s32.totalorder %s20, 1
        %s409 = scalar_select %p408, %s20, 1
        %s410 = smul.addr %s409, 2
        %s411 = scalar_lea.vmem %s0, %s410
      $region68: #{_lambda_.9} parent=63 // pred_fallthru
        _
      // Predicated region
      $region69: #{_lambda_.9} parent=63 // pred_check
        %p412 = pneg %p66
      $region70: #{_lambda_.9} parent=63 // pred_check_branch
        %414 = sbr.rel (%p412) target = $region72
      $region71: #{_lambda_.9} parent=63 // pred_region
        %p415 = scmp.lt.s32.totalorder %s20, 1
        %s416 = scalar_select %p415, %s20, 1
        %s417 = scalar_lea.vmem %s1, %s416
      $region72: #{_lambda_.9} parent=63 // pred_fallthru
        _
    $region64: #{_lambda_.9} parent=5 // pred_fallthru
      _
    %p418 = scmp.le.s32.totalorder 1, %s20
    %p419 = scmp.lt.s32.totalorder %s20, 3
    %p420 = pnand %p418, %p419
    %p421 = pneg %p420
    // Predicated region
    $region73: #{_lambda_.9} parent=5 // pred_check
      _
    $region74: #{_lambda_.9} parent=5 // pred_check_branch
      %423 = sbr.rel (%p420) target = $region76
    $region75: #{_lambda_.9} parent=5 // pred_region
      %s424 = ssub.s32 %s20, 1
      %p425 = scmp.lt.s32.totalorder %s25, 1
      %s426 = scalar_select %p425, %s25, 1
      %s427 = smul.addr %s426, 2
      %s428 = scalar_lea.vmem %s0, %s427
      %p429 = pneg %p46
      %p430 = pneg %p43
      %p431 = scmp.lt.s32.totalorder %s25, 1
      %s432 = scalar_select %p431, %s25, 1
      %s433 = scalar_lea.vmem %s1, %s432
      %p434 = pneg %p72
      %p435 = pneg %p69
      %p436 = pneg %p93
      %p437 = pneg %p90
      %p438 = pneg %p114
      %p439 = pneg %p111
      %p440 = pneg %p135
      %p441 = pneg %p132
      %p442 = pneg %p156
      %p443 = pneg %p153
      %p444 = pneg %p177
      %p445 = pneg %p174
      %p446 = pneg %p198
      %p447 = pneg %p195
      %p448 = pneg %p219
      %p449 = pneg %p216
      %p450 = pneg %p240
      %p451 = pneg %p237
      %p452 = pneg %p261
      %p453 = pneg %p258
      %p454 = pneg %p282
      %p455 = pneg %p279
      %p456 = pneg %p303
      %p457 = pneg %p300
      %p458 = pneg %p324
      %p459 = pneg %p321
      %p460 = pneg %p350
      %p461 = pneg %p347
      %p462 = scmp.lt.s32.totalorder %s25, 1
      %s463 = scalar_select %p462, %s25, 1
      %s464 = smul.addr %s463, 2
      %s465 = scalar_lea.vmem %s14, %s464
      %p466 = scmp.lt.s32.totalorder %s25, 1
      %s467 = scalar_select %p466, %s25, 1
      %s468 = smul.addr %s467, 2
      %s469 = scalar_lea.vmem %s0, %s468
      %p470 = scmp.lt.s32.totalorder %s25, 1
      %s471 = scalar_select %p470, %s25, 1
      %s472 = scalar_lea.vmem %s1, %s471
      %p473 = scmp.lt.s32.totalorder %s25, 1
      %s474 = scalar_select %p473, %s25, 1
      %s475 = smul.addr %s474, 2
      %s476 = scalar_lea.vmem %s14, %s475
      %v478 = vld [vmem:[%s469] sm:$0x3]
      %v479 = vunpack.c.l.bf16 %v478
      %v480 = vld [vmem:[%s472] sm:$0x1]
      %v481 = vsub.f32 %v480, 1.0
      %v482 = vmul.f32 %v481, 1e+30
      %v483 = vld [vmem:[%s2] sm:$0xf]
      %v484 = vld [vmem:[%s2 + $0x4] sm:$0xf]
      %v485 = vld [vmem:[%s2 + $0x8] sm:$0xf]
      %v486 = vld [vmem:[%s2 + $0xc] sm:$0xf]
      %v487 = vld [vmem:[%s3] sm:$0x1]
      %v489 = vperm.slane %v487, 0
      %v495 = vunpack.c.l.b16 %v483
      %v496 = vunpack.c.l.b16 %v484
      %v497 = vunpack.c.l.b16 %v485
      %v498 = vunpack.c.l.b16 %v486
      %v499 = vpack.c.b16 %v496, %v495
      %v500 = vpack.c.b16 %v498, %v497
      %vm503 = vcmask 261120
      %v505 = vsel %vm503, %v478, 0
      %507 = vmatpush.bf16.msra.mxu0 0
      %508 = vmatpush.bf16.msra.mxu0 0
      %509 = vmatpush.bf16.msra.mxu0 0
      %510 = vmatpush.bf16.msra.mxu0 0
      %511 = vmatpush.bf16.msra.mxu0 0
      %512 = vmatpush.bf16.msra.mxu0 0
      %513 = vmatpush.bf16.msra.mxu0 %v500
      %514 = vmatpush.bf16.msra.mxu0 %v499
      %515 = vmatmul.bf16.gmra.mxu0 %v505
      %v516 = vpop.f32.mrf.mxu0
      %v517 = vadd.f32 %v489, %v516
      %v518 = vpop.f32.mrf.mxu0
      %519 = vdwg.mxu0
      %v520 = vpack.c.bf16 %v517, %v517
      %522 = vrot.lane.b32.xlu0 %v520, 96
      %v523 = vpop.permute.xlu0 %522
      %vm524 = vcmask 64512
      %v526 = vsel %vm524, %v520, 0
      %v529 = vsel %vm524, %v523, 0
      %531 = vmatpush.bf16.xpose.msra.mxu0 0
      %532 = vmatpush.bf16.xpose.msra.mxu0 0
      %533 = vmatpush.bf16.xpose.msra.mxu0 0
      %534 = vmatpush.bf16.xpose.msra.mxu0 0
      %535 = vmatpush.bf16.xpose.msra.mxu0 0
      %536 = vmatpush.bf16.xpose.msra.mxu0 0
      %537 = vmatpush.bf16.xpose.msra.mxu0 0
      %538 = vmatpush.bf16.xpose.msra.mxu0 %v529
      %539 = vmatmul.bf16.gmra.mxu0 %v526
      %v540 = vpop.f32.mrf.mxu0
      %v541 = vadd.f32 0.0, %v540
      %v542 = vpop.f32.mrf.mxu0
      %543 = vdwg.mxu0
      %v544 = vmul.f32 %v541, 0.35355338
      %v546 = vperm.slane %v482, 0
      %v548 = vadd.f32 %v544, %v546
      %vm549 = vcmask 18432
      %v550 = vsel %vm549, %v548, -inf
      %551 = vmax.xlane.f32.xlu0 %v550
      %v552 = vpop.xlane.xlu0 %551
      %v553 = vsub.f32 %v548, %v552
      %v554 = vmul.f32 %v553, 1.442695
      %v555 = vpow.pop %v554
      %v556 = vsel %vm549, %v555, 0.0
      %557 = vadd.xlane.f32.xlu0 %v556
      %v558 = vpop.xlane.xlu0 %557
      %v559 = vrcp.pop %v558
      %v560 = vmul.f32 %v555, %v559
      %v562 = vperm.slane %v480, 0
      %v564 = vmul.f32 %v560, %v562
      %v565 = vpack.c.bf16 %v564, %v564
      %566 = vrot.lane.b32.xlu0 %v520, 64
      %v567 = vpop.permute.xlu0 %566
      %vm568 = vcmask 23552
      %v570 = vsel %vm568, %v565, 0
      %vm572 = vcmask 1040384
      %vm573 = vcmask 1041408
      %v574 = vsel %vm572, 4294967295, 65535
      %v575 = vsel %vm573, %v574, 0
      %v577 = vand.u32 %v567, %v575
      %579 = vmatpush.bf16.msra.mxu0 0
      %580 = vmatpush.bf16.msra.mxu0 0
      %581 = vmatpush.bf16.msra.mxu0 0
      %582 = vmatpush.bf16.msra.mxu0 0
      %583 = vmatpush.bf16.msra.mxu0 0
      %584 = vmatpush.bf16.msra.mxu0 0
      %585 = vmatpush.bf16.msra.mxu0 0
      %586 = vmatpush.bf16.msra.mxu0 %v577
      %587 = vmatmul.bf16.gmra.mxu0 %v570
      %v588 = vpop.f32.mrf.mxu0
      %v589 = vadd.f32 0.0, %v588
      %v590 = vpop.f32.mrf.mxu0
      %591 = vdwg.mxu0
      %592 = vrot.lane.b32.xlu0 %v520, 120
      %v593 = vpop.permute.xlu0 %592
      %594 = vrot.lane.b32.xlu0 %v520, 88
      %v595 = vpop.permute.xlu0 %594
      %v597 = vsel %vm524, %v593, 0
      %v600 = vsel %vm524, %v595, 0
      %602 = vmatpush.bf16.xpose.msra.mxu0 0
      %603 = vmatpush.bf16.xpose.msra.mxu0 0
      %604 = vmatpush.bf16.xpose.msra.mxu0 0
      %605 = vmatpush.bf16.xpose.msra.mxu0 0
      %606 = vmatpush.bf16.xpose.msra.mxu0 0
      %607 = vmatpush.bf16.xpose.msra.mxu0 0
      %608 = vmatpush.bf16.xpose.msra.mxu0 0
      %609 = vmatpush.bf16.xpose.msra.mxu0 %v600
      %610 = vmatmul.bf16.gmra.mxu0 %v597
      %v611 = vpop.f32.mrf.mxu0
      %v612 = vadd.f32 0.0, %v611
      %v613 = vpop.f32.mrf.mxu0
      %614 = vdwg.mxu0
      %v615 = vmul.f32 %v612, 0.35355338
      %v616 = vadd.f32 %v615, %v546
      %v617 = vsel %vm549, %v616, -inf
      %618 = vmax.xlane.f32.xlu0 %v617
      %v619 = vpop.xlane.xlu0 %618
      %v620 = vsub.f32 %v616, %v619
      %v621 = vmul.f32 %v620, 1.442695
      %v622 = vpow.pop %v621
      %v623 = vsel %vm549, %v622, 0.0
      %624 = vadd.xlane.f32.xlu0 %v623
      %v625 = vpop.xlane.xlu0 %624
      %v626 = vrcp.pop %v625
      %v627 = vmul.f32 %v622, %v626
      %v628 = vmul.f32 %v627, %v562
      %v629 = vpack.c.bf16 %v628, %v628
      %630 = vrot.lane.b32.xlu0 %v520, 56
      %v631 = vpop.permute.xlu0 %630
      %v633 = vsel %vm568, %v629, 0
      %v636 = vand.u32 %v631, %v575
      %638 = vmatpush.bf16.msra.mxu0 0
      %639 = vmatpush.bf16.msra.mxu0 0
      %640 = vmatpush.bf16.msra.mxu0 0
      %641 = vmatpush.bf16.msra.mxu0 0
      %642 = vmatpush.bf16.msra.mxu0 0
      %643 = vmatpush.bf16.msra.mxu0 0
      %644 = vmatpush.bf16.msra.mxu0 0
      %645 = vmatpush.bf16.msra.mxu0 %v636
      %646 = vmatmul.bf16.gmra.mxu0 %v633
      %v647 = vpop.f32.mrf.mxu0
      %v648 = vadd.f32 0.0, %v647
      %v649 = vpop.f32.mrf.mxu0
      %650 = vdwg.mxu0
      %651 = vrot.lane.b32.xlu0 %v520, 112
      %v652 = vpop.permute.xlu0 %651
      %653 = vrot.lane.b32.xlu0 %v520, 80
      %v654 = vpop.permute.xlu0 %653
      %v656 = vsel %vm524, %v652, 0
      %v659 = vsel %vm524, %v654, 0
      %661 = vmatpush.bf16.xpose.msra.mxu0 0
      %662 = vmatpush.bf16.xpose.msra.mxu0 0
      %663 = vmatpush.bf16.xpose.msra.mxu0 0
      %664 = vmatpush.bf16.xpose.msra.mxu0 0
      %665 = vmatpush.bf16.xpose.msra.mxu0 0
      %666 = vmatpush.bf16.xpose.msra.mxu0 0
      %667 = vmatpush.bf16.xpose.msra.mxu0 0
      %668 = vmatpush.bf16.xpose.msra.mxu0 %v659
      %669 = vmatmul.bf16.gmra.mxu0 %v656
      %v670 = vpop.f32.mrf.mxu0
      %v671 = vadd.f32 0.0, %v670
      %v672 = vpop.f32.mrf.mxu0
      %673 = vdwg.mxu0
      %v674 = vmul.f32 %v671, 0.35355338
      %v675 = vadd.f32 %v674, %v546
      %v676 = vsel %vm549, %v675, -inf
      %677 = vmax.xlane.f32.xlu0 %v676
      %v678 = vpop.xlane.xlu0 %677
      %v679 = vsub.f32 %v675, %v678
      %v680 = vmul.f32 %v679, 1.442695
      %v681 = vpow.pop %v680
      %v682 = vsel %vm549, %v681, 0.0
      %683 = vadd.xlane.f32.xlu0 %v682
      %v684 = vpop.xlane.xlu0 %683
      %v685 = vrcp.pop %v684
      %v686 = vmul.f32 %v681, %v685
      %v687 = vmul.f32 %v686, %v562
      %v688 = vpack.c.bf16 %v687, %v687
      %689 = vrot.lane.b32.xlu0 %v520, 48
      %v690 = vpop.permute.xlu0 %689
      %v692 = vsel %vm568, %v688, 0
      %v695 = vand.u32 %v690, %v575
      %697 = vmatpush.bf16.msra.mxu0 0
      %698 = vmatpush.bf16.msra.mxu0 0
      %699 = vmatpush.bf16.msra.mxu0 0
      %700 = vmatpush.bf16.msra.mxu0 0
      %701 = vmatpush.bf16.msra.mxu0 0
      %702 = vmatpush.bf16.msra.mxu0 0
      %703 = vmatpush.bf16.msra.mxu0 0
      %704 = vmatpush.bf16.msra.mxu0 %v695
      %705 = vmatmul.bf16.gmra.mxu0 %v692
      %v706 = vpop.f32.mrf.mxu0
      %v707 = vadd.f32 0.0, %v706
      %v708 = vpop.f32.mrf.mxu0
      %709 = vdwg.mxu0
      %710 = vrot.lane.b32.xlu0 %v520, 104
      %v711 = vpop.permute.xlu0 %710
      %712 = vrot.lane.b32.xlu0 %v520, 72
      %v713 = vpop.permute.xlu0 %712
      %v715 = vsel %vm524, %v711, 0
      %v718 = vsel %vm524, %v713, 0
      %720 = vmatpush.bf16.xpose.msra.mxu0 0
      %721 = vmatpush.bf16.xpose.msra.mxu0 0
      %722 = vmatpush.bf16.xpose.msra.mxu0 0
      %723 = vmatpush.bf16.xpose.msra.mxu0 0
      %724 = vmatpush.bf16.xpose.msra.mxu0 0
      %725 = vmatpush.bf16.xpose.msra.mxu0 0
      %726 = vmatpush.bf16.xpose.msra.mxu0 0
      %727 = vmatpush.bf16.xpose.msra.mxu0 %v718
      %728 = vmatmul.bf16.gmra.mxu0 %v715
      %v729 = vpop.f32.mrf.mxu0
      %v730 = vadd.f32 0.0, %v729
      %v731 = vpop.f32.mrf.mxu0
      %732 = vdwg.mxu0
      %v733 = vmul.f32 %v730, 0.35355338
      %v734 = vadd.f32 %v733, %v546
      %v735 = vsel %vm549, %v734, -inf
      %736 = vmax.xlane.f32.xlu0 %v735
      %v737 = vpop.xlane.xlu0 %736
      %v738 = vsub.f32 %v734, %v737
      %v739 = vmul.f32 %v738, 1.442695
      %v740 = vpow.pop %v739
      %v741 = vsel %vm549, %v740, 0.0
      %742 = vadd.xlane.f32.xlu0 %v741
      %v743 = vpop.xlane.xlu0 %742
      %v744 = vrcp.pop %v743
      %v745 = vmul.f32 %v740, %v744
      %v746 = vmul.f32 %v745, %v562
      %v747 = vpack.c.bf16 %v746, %v746
      %748 = vrot.lane.b32.xlu0 %v520, 40
      %v749 = vpop.permute.xlu0 %748
      %v751 = vsel %vm568, %v747, 0
      %v754 = vand.u32 %v749, %v575
      %756 = vmatpush.bf16.msra.mxu0 0
      %757 = vmatpush.bf16.msra.mxu0 0
      %758 = vmatpush.bf16.msra.mxu0 0
      %759 = vmatpush.bf16.msra.mxu0 0
      %760 = vmatpush.bf16.msra.mxu0 0
      %761 = vmatpush.bf16.msra.mxu0 0
      %762 = vmatpush.bf16.msra.mxu0 0
      %763 = vmatpush.bf16.msra.mxu0 %v754
      %764 = vmatmul.bf16.gmra.mxu0 %v751
      %v765 = vpop.f32.mrf.mxu0
      %v766 = vadd.f32 0.0, %v765
      %v767 = vpop.f32.mrf.mxu0
      %768 = vdwg.mxu0
      %770 = vrot.lane.b32.xlu0 %v648, 8
      %v771 = vpop.permute.xlu0 %770
      %774 = vrot.lane.b32.xlu0 %v707, 16
      %v775 = vpop.permute.xlu0 %774
      %778 = vrot.lane.b32.xlu0 %v766, 24
      %v779 = vpop.permute.xlu0 %778
      %v781 = vsel %vm524, %v589, %v771
      %vm782 = vcmask 130048
      %v783 = vsel %vm782, %v781, %v775
      %vm784 = vcmask 195584
      %v785 = vsel %vm784, %v783, %v779
      %v786 = vpack.c.bf16 %v785, %v785
      %v787 = vld [vmem:[%s4] sm:$0xf]
      %v788 = vld [vmem:[%s4 + $0x4] sm:$0xf]
      %v789 = vld [vmem:[%s4 + $0x8] sm:$0xf]
      %v790 = vld [vmem:[%s4 + $0xc] sm:$0xf]
      %v791 = vld [vmem:[%s5] sm:$0x1]
      %v793 = vperm.slane %v791, 0
      %v799 = vunpack.c.l.b16 %v787
      %v800 = vunpack.c.l.b16 %v788
      %v801 = vunpack.c.l.b16 %v789
      %v802 = vunpack.c.l.b16 %v790
      %v803 = vpack.c.b16 %v800, %v799
      %v804 = vpack.c.b16 %v802, %v801
      %v808 = vsel %vm503, %v786, 0
      %810 = vmatpush.bf16.msra.mxu0 0
      %811 = vmatpush.bf16.msra.mxu0 0
      %812 = vmatpush.bf16.msra.mxu0 0
      %813 = vmatpush.bf16.msra.mxu0 0
      %814 = vmatpush.bf16.msra.mxu0 0
      %815 = vmatpush.bf16.msra.mxu0 0
      %816 = vmatpush.bf16.msra.mxu0 %v804
      %817 = vmatpush.bf16.msra.mxu0 %v803
      %818 = vmatmul.bf16.gmra.mxu0 %v808
      %v819 = vpop.f32.mrf.mxu0
      %v820 = vadd.f32 %v793, %v819
      %v821 = vpop.f32.mrf.mxu0
      %822 = vdwg.mxu0
      %v823 = vadd.f32 %v479, %v820
      %vm824 = vcmask 256000
      %v825 = vsel %vm824, %v823, 0.0
      %826 = vadd.xlane.f32.xlu0 %v825
      %v827 = vpop.xlane.xlu0 %826
      %v828 = vrcp.pop 32.0
      %v829 = vmul.f32 32.0, %v828
      %v830 = vsub.f32 1.0, %v829
      %v831 = vmul.f32 %v828, %v830
      %v832 = vadd.f32 %v828, %v831
      %vm833 = vweird.f32 %v828
      %v834 = vsel %vm833, %v828, %v832
      %v835 = vmul.f32 %v827, %v834
      %v836 = vsub.f32 %v823, %v835
      %v837 = vmul.f32 %v836, %v836
      %v838 = vsel %vm824, %v837, 0.0
      %839 = vadd.xlane.f32.xlu0 %v838
      %v840 = vpop.xlane.xlu0 %839
      %v841 = vmul.f32 %v840, %v834
      %v842 = vadd.f32 %v841, 1e-05
      %v843 = vrsqrt.pop %v842
      %v844 = vmul.f32 %v843, %v842
      %v845 = vmul.f32 %v844, %v843
      %v846 = vmul.f32 0.5, %v845
      %v847 = vsub.f32 1.5, %v846
      %v848 = vmul.f32 %v843, %v847
      %vm849 = vweird.f32 %v842
      %vm850 = vweird.f32 %v843
      %vm851 = vmor %vm849, %vm850
      %v852 = vsel %vm851, %v843, %v848
      %v853 = vmul.f32 %v836, %v852
      %v854 = vld [vmem:[%s6] sm:$0x1]
      %v856 = vperm.slane %v854, 0
      %v858 = vmul.f32 %v853, %v856
      %v859 = vld [vmem:[%s7] sm:$0x1]
      %v861 = vperm.slane %v859, 0
      %v863 = vadd.f32 %v858, %v861
      %v864 = vpack.c.bf16 %v863, %v863
      %v865 = vld [vmem:[%s8] sm:$0xf]
      %v866 = vld [vmem:[%s8 + $0x4] sm:$0xf]
      %v867 = vld [vmem:[%s8 + $0x8] sm:$0xf]
      %v868 = vld [vmem:[%s8 + $0xc] sm:$0xf]
      %v869 = vld [vmem:[%s9] sm:$0x1]
      %v871 = vperm.slane %v869, 0
      %v877 = vunpack.c.l.b16 %v865
      %v878 = vunpack.c.l.b16 %v866
      %v879 = vunpack.c.l.b16 %v867
      %v880 = vunpack.c.l.b16 %v868
      %v881 = vpack.c.b16 %v878, %v877
      %v882 = vpack.c.b16 %v880, %v879
      %v886 = vsel %vm503, %v864, 0
      %888 = vmatpush.bf16.msra.mxu0 0
      %889 = vmatpush.bf16.msra.mxu0 0
      %890 = vmatpush.bf16.msra.mxu0 0
      %891 = vmatpush.bf16.msra.mxu0 0
      %892 = vmatpush.bf16.msra.mxu0 0
      %893 = vmatpush.bf16.msra.mxu0 0
      %894 = vmatpush.bf16.msra.mxu0 %v882
      %895 = vmatpush.bf16.msra.mxu0 %v881
      %896 = vmatmul.bf16.gmra.mxu0 %v886
      %v897 = vpop.f32.mrf.mxu0
      %v898 = vadd.f32 %v871, %v897
      %v899 = vpop.f32.mrf.mxu0
      %900 = vdwg.mxu0
      %v901 = vmax.f32 %v898, 0.0
      %v902 = vpack.c.bf16 %v901, %v901
      %v903 = vld [vmem:[%s10] sm:$0xf]
      %v904 = vld [vmem:[%s10 + $0x4] sm:$0xf]
      %v905 = vld [vmem:[%s10 + $0x8] sm:$0xf]
      %v906 = vld [vmem:[%s10 + $0xc] sm:$0xf]
      %v907 = vld [vmem:[%s10 + $0x10] sm:$0xf]
      %v908 = vld [vmem:[%s10 + $0x14] sm:$0xf]
      %v909 = vld [vmem:[%s10 + $0x18] sm:$0xf]
      %v910 = vld [vmem:[%s10 + $0x1c] sm:$0xf]
      %v919 = vunpack.c.l.b16 %v903
      %v920 = vunpack.c.l.b16 %v904
      %v921 = vunpack.c.l.b16 %v905
      %v922 = vunpack.c.l.b16 %v906
      %v923 = vunpack.c.l.b16 %v907
      %v924 = vunpack.c.l.b16 %v908
      %v925 = vunpack.c.l.b16 %v909
      %v926 = vunpack.c.l.b16 %v910
      %v927 = vpack.c.b16 %v920, %v919
      %v928 = vpack.c.b16 %v922, %v921
      %v929 = vpack.c.b16 %v924, %v923
      %v930 = vpack.c.b16 %v926, %v925
      %vm935 = vcmask 523264
      %v937 = vsel %vm935, %v902, 0
      %939 = vmatpush.bf16.msra.mxu0 0
      %940 = vmatpush.bf16.msra.mxu0 0
      %941 = vmatpush.bf16.msra.mxu0 0
      %942 = vmatpush.bf16.msra.mxu0 0
      %943 = vmatpush.bf16.msra.mxu0 %v930
      %944 = vmatpush.bf16.msra.mxu0 %v929
      %945 = vmatpush.bf16.msra.mxu0 %v928
      %946 = vmatpush.bf16.msra.mxu0 %v927
      %947 = vmatmul.bf16.gmra.mxu0 %v937
      %v948 = vpop.f32.mrf.mxu0
      %v949 = vadd.f32 0.0, %v948
      %v950 = vpop.f32.mrf.mxu0
      %951 = vdwg.mxu0
      %v952 = vadd.f32 %v863, %v949
      %v953 = vld [vmem:[%s11] sm:$0x1]
      %v955 = vperm.slane %v953, 0
      %v957 = vadd.f32 %v952, %v955
      %v958 = vsel %vm824, %v957, 0.0
      %959 = vadd.xlane.f32.xlu0 %v958
      %v960 = vpop.xlane.xlu0 %959
      %v961 = vmul.f32 %v960, %v834
      %v962 = vsub.f32 %v957, %v961
      %v963 = vmul.f32 %v962, %v962
      %v964 = vsel %vm824, %v963, 0.0
      %965 = vadd.xlane.f32.xlu0 %v964
      %v966 = vpop.xlane.xlu0 %965
      %v967 = vmul.f32 %v966, %v834
      %v968 = vadd.f32 %v967, 1e-05
      %v969 = vrsqrt.pop %v968
      %v970 = vmul.f32 %v969, %v968
      %v971 = vmul.f32 %v970, %v969
      %v972 = vmul.f32 0.5, %v971
      %v973 = vsub.f32 1.5, %v972
      %v974 = vmul.f32 %v969, %v973
      %vm975 = vweird.f32 %v968
      %vm976 = vweird.f32 %v969
      %vm977 = vmor %vm975, %vm976
      %v978 = vsel %vm977, %v969, %v974
      %v979 = vmul.f32 %v962, %v978
      %v980 = vld [vmem:[%s12] sm:$0x1]
      %v982 = vperm.slane %v980, 0
      %v984 = vmul.f32 %v979, %v982
      %v985 = vld [vmem:[%s13] sm:$0x1]
      %v987 = vperm.slane %v985, 0
      %v989 = vadd.f32 %v984, %v987
      %v990 = vpack.c.bf16 %v989, %v989
      %vm991 = vcmask 254976
      %vm992 = vsmask.f32 1280
      %vm993 = vmand %vm991, %vm992
      %v994 = vld [vmem:[%s476] sm:$0x3]
      %v995 = vsel %vm993, %v990, %v994
      %996 = vst [vmem:[%s476] sm:$0x3] %v995
      %p997 = scmp.lt.s32.totalorder %s25, 1
      %s998 = scalar_select %p997, %s25, 1
      %s999 = smul.addr %s998, 2
      %s1000 = scalar_lea.vmem %s14, %s999
      // Predicated region
      $region77: #{_lambda_.9} parent=75 // pred_check
        %p1001 = pneg %p347
      $region78: #{_lambda_.9} parent=75 // pred_check_branch
        %1003 = sbr.rel (%p1001) target = $region80
      $region79: #{_lambda_.9} parent=75 // pred_region
        _
      $region80: #{_lambda_.9} parent=75 // pred_fallthru
        _
    $region76: #{_lambda_.9} parent=5 // pred_fallthru
      _
    %p1004 = scmp.le.s32.totalorder 2, %s20
    // Predicated region
    $region81: #{_lambda_.9} parent=5 // pred_check
      %p1005 = pneg %p1004
    $region82: #{_lambda_.9} parent=5 // pred_check_branch
      %1007 = sbr.rel (%p1005) target = $region84
    $region83: #{_lambda_.9} parent=5 // pred_region
      %s1008 = ssub.s32 %s20, 2
      // Predicated region
      $region85: #{_lambda_.9} parent=83 // pred_check
        %p1009 = pneg %p353
      $region86: #{_lambda_.9} parent=83 // pred_check_branch
        %1011 = sbr.rel (%p1009) target = $region88
      $region87: #{_lambda_.9} parent=83 // pred_region
        %p1012 = scmp.lt.s32.totalorder %s26, 1
        %s1013 = scalar_select %p1012, %s26, 1
        %s1014 = smul.addr %s1013, 2
        %s1015 = scalar_lea.vmem %s14, %s1014
      $region88: #{_lambda_.9} parent=83 // pred_fallthru
        _
    $region84: #{_lambda_.9} parent=5 // pred_fallthru
      _
  $region6: #{_lambda_.9} parent=0 // loop_footer
    %s24 = sadd.s32 1, %s20
  $region7: #{_lambda_.9} parent=0 // loop_footer_branch
    %19 = sbr.rel target = $region3
  $region8: #{_lambda_.9} parent=0 // loop_exit
    _

</llo_original>
